<compile_context>
chip_gen: v6e
topology: v6e:2x2x1
jax: 0.10.0
libtpu: 0.0.40
codegen_flags: <defaults>
</compile_context>

<pallas_src>
import functools

import jax
import jax.numpy as jnp
from jax import lax
from jax.experimental import pallas as pl
from jax.experimental.pallas import tpu as pltpu


def _round_up(x, m):
    return ((x + m - 1) // m) * m


# ----------------------------------------------------------------------------
# Kernel
# ----------------------------------------------------------------------------
def mixvpr_kernel(
    x_ref,      # (Bblk, C, HWp)       bf16  (HW zero-padded to HWp)
    ln_g_ref,   # (D, HWp)             f32   (padded cols = 0)
    ln_b_ref,   # (D, HWp)             f32   (padded cols = 0)
    w1t_ref,    # (D, HWp, HWrp)       bf16  (W1^T, zero-padded)
    b1_ref,     # (D, HWrp)            f32   (padded cols = 0)
    w2t_ref,    # (D, HWrp, HWp)       bf16  (W2^T, padded rows/cols = 0)
    b2_ref,     # (D, HWp)             f32   (padded cols = 0)
    wrt_ref,    # (HWp, out_R)         bf16  (Wr^T, padded rows = 0)
    wct_ref,    # (C, out_C)           bf16  (Wc^T)
    bias_ref,   # (out_R, out_C)       f32   (br[r] + rowsum(Wr)[r] * bc[o])
    out_ref,    # (Bblk, out_R, out_C) f32   (lane-dense; transposed vs torch)
    *,
    hw_true: int,
):
    bblk, C, hwp = x_ref.shape
    mix_depth = w1t_ref.shape[0]
    inv_hw = jnp.float32(1.0 / hw_true)

    # Batched slab: LayerNorm and the mixer matmuls are row-independent, so all
    # Bblk samples share one (Bblk*C, HWp) matmul (fills the MXU M-dim).  When
    # bblk == 1 this reshape is just a squeeze; bblk > 1 is only chosen when
    # C % 8 == 0 so the merge is a free layout operation.
    x = x_ref[...].astype(jnp.float32).reshape(bblk * C, hwp)

    # --- FeatureMixer stack: x = x + W2(relu(W1(LayerNorm(x)))) --------------
    # Static unroll is fine for mix_depth ~ 4; for much deeper stacks switch to
    # lax.fori_loop with dynamic w1t_ref[l] indexing to bound live ranges.
    for l in range(mix_depth):
        gamma = ln_g_ref[l][None, :]                    # (1, HWp), padded = 0
        beta = ln_b_ref[l][None, :]
        # One-pass LN stats over the TRUE HW (padded columns are zero so the
        # sums are unaffected; divide by the real count).
        s1 = jnp.sum(x, axis=-1, keepdims=True)
        s2 = jnp.sum(x * x, axis=-1, keepdims=True)
        mean = s1 * inv_hw
        var = jnp.maximum(s2 * inv_hw - mean * mean, 0.0)
        # gamma/beta are zero in padded columns -> xn padded columns are 0.
        xn = (x - mean) * lax.rsqrt(var + 1e-5) * gamma + beta

        h = jnp.dot(xn.astype(jnp.bfloat16), w1t_ref[l],
                    preferred_element_type=jnp.float32)
        h = jnp.maximum(h + b1_ref[l][None, :], 0.0)    # padded cols stay 0
        y = jnp.dot(h.astype(jnp.bfloat16), w2t_ref[l],
                    preferred_element_type=jnp.float32)
        x = x + y + b2_ref[l][None, :]                  # padded cols stay 0

    # --- Fused projections: row_proj (HW reduction) FIRST, channel_proj after.
    #   z[o, r] = sum_c Wc[o,c] * (sum_s Wr[r,s] * x[c,s])
    #             + rowsum(Wr)[r] * bc[o] + br[r]
    # Far fewer MACs than Wc-then-Wr and no large in-kernel transpose.
    u = jnp.dot(x.astype(jnp.bfloat16), wrt_ref[...],
                preferred_element_type=jnp.float32)     # (Bblk*C, out_R)
    u_bf = u.astype(jnp.bfloat16)                       # cast before transpose
    wct = wct_ref[...]
    bias = bias_ref[...]

    for b in range(bblk):
        u_b = u_bf[b * C:(b + 1) * C]                   # (C, out_R), tiny
        zt = jnp.dot(u_b.T, wct,
                     preferred_element_type=jnp.float32) + bias  # (out_R, out_C)
        # --- L2 normalize over the flattened descriptor (order invariant) ---
        ss = jnp.sum(zt * zt)
        scale = lax.rsqrt(jnp.maximum(ss, jnp.float32(1e-24)))   # F.normalize eps
        out_ref[b] = (zt * scale).astype(out_ref.dtype)


# ----------------------------------------------------------------------------
# Host-side parameter packing (pad + transpose + bf16 for the MXU)
# ----------------------------------------------------------------------------
def pack_params(params, hw, hwp, hwrp):
    hwr = params["w1"].shape[1]

    def pad_last(a, new):
        return jnp.pad(a, [(0, 0)] * (a.ndim - 1) + [(0, new - a.shape[-1])])

    ln_g = pad_last(params["ln_g"], hwp).astype(jnp.float32)         # (D, HWp)
    ln_b = pad_last(params["ln_b"], hwp).astype(jnp.float32)

    w1t = jnp.transpose(params["w1"], (0, 2, 1))                     # (D, HW, HWr)
    w1t = jnp.pad(w1t, ((0, 0), (0, hwp - hw), (0, hwrp - hwr))).astype(jnp.bfloat16)
    b1 = pad_last(params["b1"], hwrp).astype(jnp.float32)            # (D, HWrp)

    w2t = jnp.transpose(params["w2"], (0, 2, 1))                     # (D, HWr, HW)
    w2t = jnp.pad(w2t, ((0, 0), (0, hwrp - hwr), (0, hwp - hw))).astype(jnp.bfloat16)
    b2 = pad_last(params["b2"], hwp).astype(jnp.float32)             # (D, HWp)

    # Fused projection weights: Wr^T (padded rows zero so padded columns of the
    # residual stream never contribute), Wc^T, and the folded bias cross-term.
    wr = params["wr"].astype(jnp.float32)                            # (out_R, HW)
    wrt = jnp.pad(wr.T, ((0, hwp - hw), (0, 0))).astype(jnp.bfloat16)  # (HWp, out_R)
    wct = params["wc"].T.astype(jnp.bfloat16)                        # (C, out_C)
    rowsum = jnp.sum(wr, axis=-1)                                    # (out_R,)
    bias_fused = (params["br"][:, None]
                  + rowsum[:, None] * params["bc"][None, :]).astype(jnp.float32)

    return ln_g, ln_b, w1t, b1, w2t, b2, wrt, wct, bias_fused


# ----------------------------------------------------------------------------
# Wrapper helpers
# ----------------------------------------------------------------------------
def _vmem_limit_bytes():
    # Derive per chip generation (64 MiB/TC on v7x, 128 MiB on v5e/v6e) and
    # leave headroom for Mosaic internal scratch / output / semaphores.
    try:
        cap = int(pltpu.get_tpu_info().vmem_capacity_bytes)
    except Exception:  # conservative fallback
        cap = 64 * 1024 * 1024
    return max(cap - 16 * 1024 * 1024, 32 * 1024 * 1024)


def _choose_block_batch(B, C):
    # Batch samples per grid step when C alone underfills the MXU M-dim.
    # Only when C % 8 == 0 so the (Bblk, C, HWp) -> (Bblk*C, HWp) merge is a
    # free layout operation.
    if C >= 256 or C % 8 != 0:
        return 1
    return max(1, min(B, 256 // C, 8))


# ----------------------------------------------------------------------------
# Wrapper
# ----------------------------------------------------------------------------
def mixvpr_forward(x, params):
    """x: (B, C, H, W) float32; returns (B, out_channels * out_rows)."""
    B, C, H, W = x.shape
    hw = H * W
    D = params["w1"].shape[0]
    hwr = params["w1"].shape[1]
    out_c = params["wc"].shape[0]
    out_r = params["wr"].shape[0]

    hwp = _round_up(hw, 128)
    hwrp = _round_up(hwr, 128)

    bblk = _choose_block_batch(B, C)
    b_pad = _round_up(B, bblk)

    # bf16 input halves the only per-step HBM->VMEM DMA; the kernel upcasts to
    # f32 for the residual / LayerNorm math (accumulation is f32 throughout).
    x_flat = jnp.pad(x.reshape(B, C, hw).astype(jnp.bfloat16),
                     ((0, b_pad - B), (0, 0), (0, hwp - hw)))
    packed = pack_params(params, hw, hwp, hwrp)

    # Grid-invariant weights: constant index_map + single buffering (no point
    # double-buffering blocks that never change -> halves weight VMEM).
    def wspec(shape):
        return pl.BlockSpec(shape, lambda g: (0,) * len(shape),
                            pipeline_mode=pl.Buffered(1))

    out = pl.pallas_call(
        functools.partial(mixvpr_kernel, hw_true=hw),
        out_shape=jax.ShapeDtypeStruct((b_pad, out_r, out_c), jnp.float32),
        grid_spec=pltpu.PrefetchScalarGridSpec(
            num_scalar_prefetch=0,
            grid=(b_pad // bblk,),
            in_specs=[
                pl.BlockSpec((bblk, C, hwp), lambda g: (g, 0, 0)),  # x (bf16)
                wspec((D, hwp)),          # ln gamma
                wspec((D, hwp)),          # ln beta
                wspec((D, hwp, hwrp)),    # W1^T (bf16)
                wspec((D, hwrp)),         # b1
                wspec((D, hwrp, hwp)),    # W2^T (bf16)
                wspec((D, hwp)),          # b2
                wspec((hwp, out_r)),      # Wr^T (bf16, padded rows zero)
                wspec((C, out_c)),        # Wc^T (bf16)
                wspec((out_r, out_c)),    # fused projection bias
            ],
            out_specs=pl.BlockSpec((bblk, out_r, out_c), lambda g: (g, 0, 0)),
        ),
        compiler_params=pltpu.CompilerParams(
            dimension_semantics=("parallel",),       # sample blocks independent
            vmem_limit_bytes=_vmem_limit_bytes(),
        ),
    )(x_flat, *packed)

    # Kernel emits lane-dense (out_rows, out_C); torch flattens (out_C, out_rows).
    out = out[:B]
    return jnp.transpose(out, (0, 2, 1)).reshape(B, out_c * out_r)


# ----------------------------------------------------------------------------
# Deterministic parameter init (torch layouts; trunc_normal std=0.02 ~ normal)
# ----------------------------------------------------------------------------
def init_params(key, in_channels, in_h, in_w, out_channels, mix_depth,
                mlp_ratio, out_rows):
    hw = in_h * in_w
    hwr = int(hw * mlp_ratio)
    keys = jax.random.split(key, 2 * mix_depth + 4)

    w1 = jnp.stack([jax.random.normal(keys[2 * l], (hwr, hw)) * 0.02
                    for l in range(mix_depth)])
    w2 = jnp.stack([jax.random.normal(keys[2 * l + 1], (hw, hwr)) * 0.02
                    for l in range(mix_depth)])

    return {
        "ln_g": jnp.ones((mix_depth, hw), jnp.float32),
        "ln_b": jnp.zeros((mix_depth, hw), jnp.float32),
        "w1": w1.astype(jnp.float32),                     # (D, HWr, HW)
        "b1": jnp.zeros((mix_depth, hwr), jnp.float32),
        "w2": w2.astype(jnp.float32),                     # (D, HW, HWr)
        "b2": jnp.zeros((mix_depth, hw), jnp.float32),
        # channel_proj / row_proj: deterministic init with nonzero biases to
        # exercise the fused-bias cross-term and padded-column handling.
        "wc": (jax.random.normal(keys[-4], (out_channels, in_channels)) * 0.02
               ).astype(jnp.float32),
        "bc": (jax.random.normal(keys[-2], (out_channels,)) * 0.02
               ).astype(jnp.float32),
        "wr": (jax.random.normal(keys[-3], (out_rows, hw)) * 0.02
               ).astype(jnp.float32),
        "br": (jax.random.normal(keys[-1], (out_rows,)) * 0.02
               ).astype(jnp.float32),
    }


# ----------------------------------------------------------------------------
# Pure-JAX f32 reference mirroring the PyTorch forward exactly.
# ----------------------------------------------------------------------------
def mixvpr_reference(x, params):
    B, C, H, W = x.shape
    hw = H * W
    D = params["w1"].shape[0]
    xf = x.reshape(B, C, hw).astype(jnp.float32)
    for l in range(D):
        mean = jnp.mean(xf, axis=-1, keepdims=True)
        var = jnp.mean((xf - mean) ** 2, axis=-1, keepdims=True)
        xn = (xf - mean) * lax.rsqrt(var + 1e-5)
        xn = xn * params["ln_g"][l] + params["ln_b"][l]
        h = jnp.maximum(xn @ params["w1"][l].T + params["b1"][l], 0.0)
        xf = xf + h @ params["w2"][l].T + params["b2"][l]
    # channel_proj (over C), then row_proj (over HW), torch ordering.
    y = jnp.einsum("bcs,oc->bos", xf, params["wc"]) + params["bc"][None, :, None]
    z = jnp.einsum("bos,rs->bor", y, params["wr"]) + params["br"]
    flat = z.reshape(B, -1)
    nrm = jnp.maximum(jnp.linalg.norm(flat, axis=-1, keepdims=True), 1e-12)
    return flat / nrm


if __name__ == "__main__":
    # Small shapes consistent with MixVPR's forward.
    B, in_channels, in_h, in_w = 2, 32, 4, 4
    out_channels, mix_depth, mlp_ratio, out_rows = 32, 4, 1, 4

    key = jax.random.PRNGKey(0)
    kx, kp = jax.random.split(key)
    x = jax.random.normal(kx, (B, in_channels, in_h, in_w), dtype=jnp.float32)
    params = init_params(kp, in_channels, in_h, in_w, out_channels,
                         mix_depth, mlp_ratio, out_rows)

    out = jax.block_until_ready(mixvpr_forward(x, params))
    assert out.shape == (B, out_channels * out_rows), out.shape

    # Compare against a torch-semantics f32 reference.  The kernel uses bf16
    # MXU operands (incl. bf16 input DMA) with f32 accumulation, so allow a
    # bf16-scale tolerance on the unit-normalized descriptor.
    ref = mixvpr_reference(x, params)
    err = float(jnp.max(jnp.abs(out - ref)))
    assert err < 2e-2, err

    print("KERNEL_OK")
</pallas_src>

<mosaic_0001>
module attributes {stable_mosaic.version = 11 : i64} {
  func.func @mixvpr_kernel(%arg0: i32, %arg1: memref<2x32x128xbf16, #tpu.memory_space<vmem>>, %arg2: memref<4x128xf32, #tpu.memory_space<vmem>>, %arg3: memref<4x128xf32, #tpu.memory_space<vmem>>, %arg4: memref<4x128x128xbf16, #tpu.memory_space<vmem>>, %arg5: memref<4x128xf32, #tpu.memory_space<vmem>>, %arg6: memref<4x128x128xbf16, #tpu.memory_space<vmem>>, %arg7: memref<4x128xf32, #tpu.memory_space<vmem>>, %arg8: memref<128x4xbf16, #tpu.memory_space<vmem>>, %arg9: memref<32x32xbf16, #tpu.memory_space<vmem>>, %arg10: memref<4x32xf32, #tpu.memory_space<vmem>>, %arg11: memref<2x4x32xf32, #tpu.memory_space<vmem>>) attributes {dimension_semantics = [#tpu.dimension_semantics<parallel>], iteration_bounds = array<i64: 1>, scalar_prefetch = 0 : i64, scratch_operands = 0 : i64, tpu.core_type = #tpu.core_type<tc>, window_params = [{transform_indices = @transform_0, window_bounds = array<i64: 2, 32, 128>}, {pipeline_mode = #tpu.pipeline_mode<synchronous>, transform_indices = @transform_1, window_bounds = array<i64: 4, 128>}, {pipeline_mode = #tpu.pipeline_mode<synchronous>, transform_indices = @transform_2, window_bounds = array<i64: 4, 128>}, {pipeline_mode = #tpu.pipeline_mode<synchronous>, transform_indices = @transform_3, window_bounds = array<i64: 4, 128, 128>}, {pipeline_mode = #tpu.pipeline_mode<synchronous>, transform_indices = @transform_4, window_bounds = array<i64: 4, 128>}, {pipeline_mode = #tpu.pipeline_mode<synchronous>, transform_indices = @transform_5, window_bounds = array<i64: 4, 128, 128>}, {pipeline_mode = #tpu.pipeline_mode<synchronous>, transform_indices = @transform_6, window_bounds = array<i64: 4, 128>}, {pipeline_mode = #tpu.pipeline_mode<synchronous>, transform_indices = @transform_7, window_bounds = array<i64: 128, 4>}, {pipeline_mode = #tpu.pipeline_mode<synchronous>, transform_indices = @transform_8, window_bounds = array<i64: 32, 32>}, {pipeline_mode = #tpu.pipeline_mode<synchronous>, transform_indices = @transform_9, window_bounds = array<i64: 4, 32>}, {transform_indices = @transform_10, window_bounds = array<i64: 2, 4, 32>}]} {
    %c0 = arith.constant 0 : index
    %c0_0 = arith.constant 0 : index
    %c0_1 = arith.constant 0 : index
    %0 = vector.load %arg1[%c0, %c0_0, %c0_1] : memref<2x32x128xbf16, #tpu.memory_space<vmem>>, vector<2x32x128xbf16>
    %1 = arith.extf %0 : vector<2x32x128xbf16> to vector<2x32x128xf32>
    %2 = vector.shape_cast %1 : vector<2x32x128xf32> to vector<64x128xf32>
    %c0_2 = arith.constant 0 : index
    %c0_3 = arith.constant 0 : index
    %3 = vector.load %arg2[%c0_2, %c0_3] : memref<4x128xf32, #tpu.memory_space<vmem>>, vector<1x128xf32>
    %4 = vector.shape_cast %3 : vector<1x128xf32> to vector<128xf32>
    %5 = vector.shape_cast %4 : vector<128xf32> to vector<1x128xf32>
    %c0_4 = arith.constant 0 : index
    %c0_5 = arith.constant 0 : index
    %6 = vector.load %arg3[%c0_4, %c0_5] : memref<4x128xf32, #tpu.memory_space<vmem>>, vector<1x128xf32>
    %7 = vector.shape_cast %6 : vector<1x128xf32> to vector<128xf32>
    %8 = vector.shape_cast %7 : vector<128xf32> to vector<1x128xf32>
    %cst = arith.constant dense<0.000000e+00> : vector<64xf32>
    %9 = vector.multi_reduction <add>, %2, %cst [1] : vector<64x128xf32> to vector<64xf32>
    %10 = vector.shape_cast %9 : vector<64xf32> to vector<64x1xf32>
    %11 = arith.mulf %2, %2 : vector<64x128xf32>
    %cst_6 = arith.constant dense<0.000000e+00> : vector<64xf32>
    %12 = vector.multi_reduction <add>, %11, %cst_6 [1] : vector<64x128xf32> to vector<64xf32>
    %13 = vector.shape_cast %12 : vector<64xf32> to vector<64x1xf32>
    %cst_7 = arith.constant 6.250000e-02 : f32
    %14 = vector.broadcast %cst_7 : f32 to vector<64x1xf32>
    %15 = arith.mulf %10, %14 : vector<64x1xf32>
    %cst_8 = arith.constant 6.250000e-02 : f32
    %16 = vector.broadcast %cst_8 : f32 to vector<64x1xf32>
    %17 = arith.mulf %13, %16 : vector<64x1xf32>
    %18 = arith.mulf %15, %15 : vector<64x1xf32>
    %19 = arith.subf %17, %18 : vector<64x1xf32>
    %cst_9 = arith.constant 0.000000e+00 : f32
    %20 = vector.broadcast %cst_9 : f32 to vector<64x1xf32>
    %21 = arith.maximumf %19, %20 : vector<64x1xf32>
    %22 = vector.broadcast %15 : vector<64x1xf32> to vector<64x128xf32>
    %23 = arith.subf %2, %22 : vector<64x128xf32>
    %cst_10 = arith.constant 9.99999974E-6 : f32
    %24 = vector.broadcast %cst_10 : f32 to vector<64x1xf32>
    %25 = arith.addf %21, %24 : vector<64x1xf32>
    %26 = math.rsqrt %25 : vector<64x1xf32>
    %27 = vector.broadcast %26 : vector<64x1xf32> to vector<64x128xf32>
    %28 = arith.mulf %23, %27 : vector<64x128xf32>
    %29 = vector.broadcast %5 : vector<1x128xf32> to vector<64x128xf32>
    %30 = arith.mulf %28, %29 : vector<64x128xf32>
    %31 = vector.broadcast %8 : vector<1x128xf32> to vector<64x128xf32>
    %32 = arith.addf %30, %31 : vector<64x128xf32>
    %33 = arith.truncf %32 : vector<64x128xf32> to vector<64x128xbf16>
    %c0_11 = arith.constant 0 : index
    %c0_12 = arith.constant 0 : index
    %c0_13 = arith.constant 0 : index
    %34 = vector.load %arg4[%c0_11, %c0_12, %c0_13] : memref<4x128x128xbf16, #tpu.memory_space<vmem>>, vector<1x128x128xbf16>
    %35 = vector.shape_cast %34 : vector<1x128x128xbf16> to vector<128x128xbf16>
    %cst_14 = arith.constant dense<0.000000e+00> : vector<64x128xf32>
    %36 = tpu.matmul %33, %35, %cst_14 {dimension_numbers = #tpu.dot_dimension_numbers<[1], [0], [0], [1], [0, 0, 1, 1], [], []>} : vector<64x128xbf16>, vector<128x128xbf16>, vector<64x128xf32> -> vector<64x128xf32>
    %c0_15 = arith.constant 0 : index
    %c0_16 = arith.constant 0 : index
    %37 = vector.load %arg5[%c0_15, %c0_16] : memref<4x128xf32, #tpu.memory_space<vmem>>, vector<1x128xf32>
    %38 = vector.shape_cast %37 : vector<1x128xf32> to vector<128xf32>
    %39 = vector.shape_cast %38 : vector<128xf32> to vector<1x128xf32>
    %40 = vector.broadcast %39 : vector<1x128xf32> to vector<64x128xf32>
    %41 = arith.addf %36, %40 : vector<64x128xf32>
    %cst_17 = arith.constant 0.000000e+00 : f32
    %42 = vector.broadcast %cst_17 : f32 to vector<64x128xf32>
    %43 = arith.maximumf %41, %42 : vector<64x128xf32>
    %44 = arith.truncf %43 : vector<64x128xf32> to vector<64x128xbf16>
    %c0_18 = arith.constant 0 : index
    %c0_19 = arith.constant 0 : index
    %c0_20 = arith.constant 0 : index
    %45 = vector.load %arg6[%c0_18, %c0_19, %c0_20] : memref<4x128x128xbf16, #tpu.memory_space<vmem>>, vector<1x128x128xbf16>
    %46 = vector.shape_cast %45 : vector<1x128x128xbf16> to vector<128x128xbf16>
    %cst_21 = arith.constant dense<0.000000e+00> : vector<64x128xf32>
    %47 = tpu.matmul %44, %46, %cst_21 {dimension_numbers = #tpu.dot_dimension_numbers<[1], [0], [0], [1], [0, 0, 1, 1], [], []>} : vector<64x128xbf16>, vector<128x128xbf16>, vector<64x128xf32> -> vector<64x128xf32>
    %48 = arith.addf %2, %47 : vector<64x128xf32>
    %c0_22 = arith.constant 0 : index
    %c0_23 = arith.constant 0 : index
    %49 = vector.load %arg7[%c0_22, %c0_23] : memref<4x128xf32, #tpu.memory_space<vmem>>, vector<1x128xf32>
    %50 = vector.shape_cast %49 : vector<1x128xf32> to vector<128xf32>
    %51 = vector.shape_cast %50 : vector<128xf32> to vector<1x128xf32>
    %52 = vector.broadcast %51 : vector<1x128xf32> to vector<64x128xf32>
    %53 = arith.addf %48, %52 : vector<64x128xf32>
    %c1 = arith.constant 1 : index
    %c0_24 = arith.constant 0 : index
    %54 = vector.load %arg2[%c1, %c0_24] : memref<4x128xf32, #tpu.memory_space<vmem>>, vector<1x128xf32>
    %55 = vector.shape_cast %54 : vector<1x128xf32> to vector<128xf32>
    %56 = vector.shape_cast %55 : vector<128xf32> to vector<1x128xf32>
    %c1_25 = arith.constant 1 : index
    %c0_26 = arith.constant 0 : index
    %57 = vector.load %arg3[%c1_25, %c0_26] : memref<4x128xf32, #tpu.memory_space<vmem>>, vector<1x128xf32>
    %58 = vector.shape_cast %57 : vector<1x128xf32> to vector<128xf32>
    %59 = vector.shape_cast %58 : vector<128xf32> to vector<1x128xf32>
    %cst_27 = arith.constant dense<0.000000e+00> : vector<64xf32>
    %60 = vector.multi_reduction <add>, %53, %cst_27 [1] : vector<64x128xf32> to vector<64xf32>
    %61 = vector.shape_cast %60 : vector<64xf32> to vector<64x1xf32>
    %62 = arith.mulf %53, %53 : vector<64x128xf32>
    %cst_28 = arith.constant dense<0.000000e+00> : vector<64xf32>
    %63 = vector.multi_reduction <add>, %62, %cst_28 [1] : vector<64x128xf32> to vector<64xf32>
    %64 = vector.shape_cast %63 : vector<64xf32> to vector<64x1xf32>
    %cst_29 = arith.constant 6.250000e-02 : f32
    %65 = vector.broadcast %cst_29 : f32 to vector<64x1xf32>
    %66 = arith.mulf %61, %65 : vector<64x1xf32>
    %cst_30 = arith.constant 6.250000e-02 : f32
    %67 = vector.broadcast %cst_30 : f32 to vector<64x1xf32>
    %68 = arith.mulf %64, %67 : vector<64x1xf32>
    %69 = arith.mulf %66, %66 : vector<64x1xf32>
    %70 = arith.subf %68, %69 : vector<64x1xf32>
    %cst_31 = arith.constant 0.000000e+00 : f32
    %71 = vector.broadcast %cst_31 : f32 to vector<64x1xf32>
    %72 = arith.maximumf %70, %71 : vector<64x1xf32>
    %73 = vector.broadcast %66 : vector<64x1xf32> to vector<64x128xf32>
    %74 = arith.subf %53, %73 : vector<64x128xf32>
    %cst_32 = arith.constant 9.99999974E-6 : f32
    %75 = vector.broadcast %cst_32 : f32 to vector<64x1xf32>
    %76 = arith.addf %72, %75 : vector<64x1xf32>
    %77 = math.rsqrt %76 : vector<64x1xf32>
    %78 = vector.broadcast %77 : vector<64x1xf32> to vector<64x128xf32>
    %79 = arith.mulf %74, %78 : vector<64x128xf32>
    %80 = vector.broadcast %56 : vector<1x128xf32> to vector<64x128xf32>
    %81 = arith.mulf %79, %80 : vector<64x128xf32>
    %82 = vector.broadcast %59 : vector<1x128xf32> to vector<64x128xf32>
    %83 = arith.addf %81, %82 : vector<64x128xf32>
    %84 = arith.truncf %83 : vector<64x128xf32> to vector<64x128xbf16>
    %c1_33 = arith.constant 1 : index
    %c0_34 = arith.constant 0 : index
    %c0_35 = arith.constant 0 : index
    %85 = vector.load %arg4[%c1_33, %c0_34, %c0_35] : memref<4x128x128xbf16, #tpu.memory_space<vmem>>, vector<1x128x128xbf16>
    %86 = vector.shape_cast %85 : vector<1x128x128xbf16> to vector<128x128xbf16>
    %cst_36 = arith.constant dense<0.000000e+00> : vector<64x128xf32>
    %87 = tpu.matmul %84, %86, %cst_36 {dimension_numbers = #tpu.dot_dimension_numbers<[1], [0], [0], [1], [0, 0, 1, 1], [], []>} : vector<64x128xbf16>, vector<128x128xbf16>, vector<64x128xf32> -> vector<64x128xf32>
    %c1_37 = arith.constant 1 : index
    %c0_38 = arith.constant 0 : index
    %88 = vector.load %arg5[%c1_37, %c0_38] : memref<4x128xf32, #tpu.memory_space<vmem>>, vector<1x128xf32>
    %89 = vector.shape_cast %88 : vector<1x128xf32> to vector<128xf32>
    %90 = vector.shape_cast %89 : vector<128xf32> to vector<1x128xf32>
    %91 = vector.broadcast %90 : vector<1x128xf32> to vector<64x128xf32>
    %92 = arith.addf %87, %91 : vector<64x128xf32>
    %cst_39 = arith.constant 0.000000e+00 : f32
    %93 = vector.broadcast %cst_39 : f32 to vector<64x128xf32>
    %94 = arith.maximumf %92, %93 : vector<64x128xf32>
    %95 = arith.truncf %94 : vector<64x128xf32> to vector<64x128xbf16>
    %c1_40 = arith.constant 1 : index
    %c0_41 = arith.constant 0 : index
    %c0_42 = arith.constant 0 : index
    %96 = vector.load %arg6[%c1_40, %c0_41, %c0_42] : memref<4x128x128xbf16, #tpu.memory_space<vmem>>, vector<1x128x128xbf16>
    %97 = vector.shape_cast %96 : vector<1x128x128xbf16> to vector<128x128xbf16>
    %cst_43 = arith.constant dense<0.000000e+00> : vector<64x128xf32>
    %98 = tpu.matmul %95, %97, %cst_43 {dimension_numbers = #tpu.dot_dimension_numbers<[1], [0], [0], [1], [0, 0, 1, 1], [], []>} : vector<64x128xbf16>, vector<128x128xbf16>, vector<64x128xf32> -> vector<64x128xf32>
    %99 = arith.addf %53, %98 : vector<64x128xf32>
    %c1_44 = arith.constant 1 : index
    %c0_45 = arith.constant 0 : index
    %100 = vector.load %arg7[%c1_44, %c0_45] : memref<4x128xf32, #tpu.memory_space<vmem>>, vector<1x128xf32>
    %101 = vector.shape_cast %100 : vector<1x128xf32> to vector<128xf32>
    %102 = vector.shape_cast %101 : vector<128xf32> to vector<1x128xf32>
    %103 = vector.broadcast %102 : vector<1x128xf32> to vector<64x128xf32>
    %104 = arith.addf %99, %103 : vector<64x128xf32>
    %c2 = arith.constant 2 : index
    %c0_46 = arith.constant 0 : index
    %105 = vector.load %arg2[%c2, %c0_46] : memref<4x128xf32, #tpu.memory_space<vmem>>, vector<1x128xf32>
    %106 = vector.shape_cast %105 : vector<1x128xf32> to vector<128xf32>
    %107 = vector.shape_cast %106 : vector<128xf32> to vector<1x128xf32>
    %c2_47 = arith.constant 2 : index
    %c0_48 = arith.constant 0 : index
    %108 = vector.load %arg3[%c2_47, %c0_48] : memref<4x128xf32, #tpu.memory_space<vmem>>, vector<1x128xf32>
    %109 = vector.shape_cast %108 : vector<1x128xf32> to vector<128xf32>
    %110 = vector.shape_cast %109 : vector<128xf32> to vector<1x128xf32>
    %cst_49 = arith.constant dense<0.000000e+00> : vector<64xf32>
    %111 = vector.multi_reduction <add>, %104, %cst_49 [1] : vector<64x128xf32> to vector<64xf32>
    %112 = vector.shape_cast %111 : vector<64xf32> to vector<64x1xf32>
    %113 = arith.mulf %104, %104 : vector<64x128xf32>
    %cst_50 = arith.constant dense<0.000000e+00> : vector<64xf32>
    %114 = vector.multi_reduction <add>, %113, %cst_50 [1] : vector<64x128xf32> to vector<64xf32>
    %115 = vector.shape_cast %114 : vector<64xf32> to vector<64x1xf32>
    %cst_51 = arith.constant 6.250000e-02 : f32
    %116 = vector.broadcast %cst_51 : f32 to vector<64x1xf32>
    %117 = arith.mulf %112, %116 : vector<64x1xf32>
    %cst_52 = arith.constant 6.250000e-02 : f32
    %118 = vector.broadcast %cst_52 : f32 to vector<64x1xf32>
    %119 = arith.mulf %115, %118 : vector<64x1xf32>
    %120 = arith.mulf %117, %117 : vector<64x1xf32>
    %121 = arith.subf %119, %120 : vector<64x1xf32>
    %cst_53 = arith.constant 0.000000e+00 : f32
    %122 = vector.broadcast %cst_53 : f32 to vector<64x1xf32>
    %123 = arith.maximumf %121, %122 : vector<64x1xf32>
    %124 = vector.broadcast %117 : vector<64x1xf32> to vector<64x128xf32>
    %125 = arith.subf %104, %124 : vector<64x128xf32>
    %cst_54 = arith.constant 9.99999974E-6 : f32
    %126 = vector.broadcast %cst_54 : f32 to vector<64x1xf32>
    %127 = arith.addf %123, %126 : vector<64x1xf32>
    %128 = math.rsqrt %127 : vector<64x1xf32>
    %129 = vector.broadcast %128 : vector<64x1xf32> to vector<64x128xf32>
    %130 = arith.mulf %125, %129 : vector<64x128xf32>
    %131 = vector.broadcast %107 : vector<1x128xf32> to vector<64x128xf32>
    %132 = arith.mulf %130, %131 : vector<64x128xf32>
    %133 = vector.broadcast %110 : vector<1x128xf32> to vector<64x128xf32>
    %134 = arith.addf %132, %133 : vector<64x128xf32>
    %135 = arith.truncf %134 : vector<64x128xf32> to vector<64x128xbf16>
    %c2_55 = arith.constant 2 : index
    %c0_56 = arith.constant 0 : index
    %c0_57 = arith.constant 0 : index
    %136 = vector.load %arg4[%c2_55, %c0_56, %c0_57] : memref<4x128x128xbf16, #tpu.memory_space<vmem>>, vector<1x128x128xbf16>
    %137 = vector.shape_cast %136 : vector<1x128x128xbf16> to vector<128x128xbf16>
    %cst_58 = arith.constant dense<0.000000e+00> : vector<64x128xf32>
    %138 = tpu.matmul %135, %137, %cst_58 {dimension_numbers = #tpu.dot_dimension_numbers<[1], [0], [0], [1], [0, 0, 1, 1], [], []>} : vector<64x128xbf16>, vector<128x128xbf16>, vector<64x128xf32> -> vector<64x128xf32>
    %c2_59 = arith.constant 2 : index
    %c0_60 = arith.constant 0 : index
    %139 = vector.load %arg5[%c2_59, %c0_60] : memref<4x128xf32, #tpu.memory_space<vmem>>, vector<1x128xf32>
    %140 = vector.shape_cast %139 : vector<1x128xf32> to vector<128xf32>
    %141 = vector.shape_cast %140 : vector<128xf32> to vector<1x128xf32>
    %142 = vector.broadcast %141 : vector<1x128xf32> to vector<64x128xf32>
    %143 = arith.addf %138, %142 : vector<64x128xf32>
    %cst_61 = arith.constant 0.000000e+00 : f32
    %144 = vector.broadcast %cst_61 : f32 to vector<64x128xf32>
    %145 = arith.maximumf %143, %144 : vector<64x128xf32>
    %146 = arith.truncf %145 : vector<64x128xf32> to vector<64x128xbf16>
    %c2_62 = arith.constant 2 : index
    %c0_63 = arith.constant 0 : index
    %c0_64 = arith.constant 0 : index
    %147 = vector.load %arg6[%c2_62, %c0_63, %c0_64] : memref<4x128x128xbf16, #tpu.memory_space<vmem>>, vector<1x128x128xbf16>
    %148 = vector.shape_cast %147 : vector<1x128x128xbf16> to vector<128x128xbf16>
    %cst_65 = arith.constant dense<0.000000e+00> : vector<64x128xf32>
    %149 = tpu.matmul %146, %148, %cst_65 {dimension_numbers = #tpu.dot_dimension_numbers<[1], [0], [0], [1], [0, 0, 1, 1], [], []>} : vector<64x128xbf16>, vector<128x128xbf16>, vector<64x128xf32> -> vector<64x128xf32>
    %150 = arith.addf %104, %149 : vector<64x128xf32>
    %c2_66 = arith.constant 2 : index
    %c0_67 = arith.constant 0 : index
    %151 = vector.load %arg7[%c2_66, %c0_67] : memref<4x128xf32, #tpu.memory_space<vmem>>, vector<1x128xf32>
    %152 = vector.shape_cast %151 : vector<1x128xf32> to vector<128xf32>
    %153 = vector.shape_cast %152 : vector<128xf32> to vector<1x128xf32>
    %154 = vector.broadcast %153 : vector<1x128xf32> to vector<64x128xf32>
    %155 = arith.addf %150, %154 : vector<64x128xf32>
    %c3 = arith.constant 3 : index
    %c0_68 = arith.constant 0 : index
    %156 = vector.load %arg2[%c3, %c0_68] : memref<4x128xf32, #tpu.memory_space<vmem>>, vector<1x128xf32>
    %157 = vector.shape_cast %156 : vector<1x128xf32> to vector<128xf32>
    %158 = vector.shape_cast %157 : vector<128xf32> to vector<1x128xf32>
    %c3_69 = arith.constant 3 : index
    %c0_70 = arith.constant 0 : index
    %159 = vector.load %arg3[%c3_69, %c0_70] : memref<4x128xf32, #tpu.memory_space<vmem>>, vector<1x128xf32>
    %160 = vector.shape_cast %159 : vector<1x128xf32> to vector<128xf32>
    %161 = vector.shape_cast %160 : vector<128xf32> to vector<1x128xf32>
    %cst_71 = arith.constant dense<0.000000e+00> : vector<64xf32>
    %162 = vector.multi_reduction <add>, %155, %cst_71 [1] : vector<64x128xf32> to vector<64xf32>
    %163 = vector.shape_cast %162 : vector<64xf32> to vector<64x1xf32>
    %164 = arith.mulf %155, %155 : vector<64x128xf32>
    %cst_72 = arith.constant dense<0.000000e+00> : vector<64xf32>
    %165 = vector.multi_reduction <add>, %164, %cst_72 [1] : vector<64x128xf32> to vector<64xf32>
    %166 = vector.shape_cast %165 : vector<64xf32> to vector<64x1xf32>
    %cst_73 = arith.constant 6.250000e-02 : f32
    %167 = vector.broadcast %cst_73 : f32 to vector<64x1xf32>
    %168 = arith.mulf %163, %167 : vector<64x1xf32>
    %cst_74 = arith.constant 6.250000e-02 : f32
    %169 = vector.broadcast %cst_74 : f32 to vector<64x1xf32>
    %170 = arith.mulf %166, %169 : vector<64x1xf32>
    %171 = arith.mulf %168, %168 : vector<64x1xf32>
    %172 = arith.subf %170, %171 : vector<64x1xf32>
    %cst_75 = arith.constant 0.000000e+00 : f32
    %173 = vector.broadcast %cst_75 : f32 to vector<64x1xf32>
    %174 = arith.maximumf %172, %173 : vector<64x1xf32>
    %175 = vector.broadcast %168 : vector<64x1xf32> to vector<64x128xf32>
    %176 = arith.subf %155, %175 : vector<64x128xf32>
    %cst_76 = arith.constant 9.99999974E-6 : f32
    %177 = vector.broadcast %cst_76 : f32 to vector<64x1xf32>
    %178 = arith.addf %174, %177 : vector<64x1xf32>
    %179 = math.rsqrt %178 : vector<64x1xf32>
    %180 = vector.broadcast %179 : vector<64x1xf32> to vector<64x128xf32>
    %181 = arith.mulf %176, %180 : vector<64x128xf32>
    %182 = vector.broadcast %158 : vector<1x128xf32> to vector<64x128xf32>
    %183 = arith.mulf %181, %182 : vector<64x128xf32>
    %184 = vector.broadcast %161 : vector<1x128xf32> to vector<64x128xf32>
    %185 = arith.addf %183, %184 : vector<64x128xf32>
    %186 = arith.truncf %185 : vector<64x128xf32> to vector<64x128xbf16>
    %c3_77 = arith.constant 3 : index
    %c0_78 = arith.constant 0 : index
    %c0_79 = arith.constant 0 : index
    %187 = vector.load %arg4[%c3_77, %c0_78, %c0_79] : memref<4x128x128xbf16, #tpu.memory_space<vmem>>, vector<1x128x128xbf16>
    %188 = vector.shape_cast %187 : vector<1x128x128xbf16> to vector<128x128xbf16>
    %cst_80 = arith.constant dense<0.000000e+00> : vector<64x128xf32>
    %189 = tpu.matmul %186, %188, %cst_80 {dimension_numbers = #tpu.dot_dimension_numbers<[1], [0], [0], [1], [0, 0, 1, 1], [], []>} : vector<64x128xbf16>, vector<128x128xbf16>, vector<64x128xf32> -> vector<64x128xf32>
    %c3_81 = arith.constant 3 : index
    %c0_82 = arith.constant 0 : index
    %190 = vector.load %arg5[%c3_81, %c0_82] : memref<4x128xf32, #tpu.memory_space<vmem>>, vector<1x128xf32>
    %191 = vector.shape_cast %190 : vector<1x128xf32> to vector<128xf32>
    %192 = vector.shape_cast %191 : vector<128xf32> to vector<1x128xf32>
    %193 = vector.broadcast %192 : vector<1x128xf32> to vector<64x128xf32>
    %194 = arith.addf %189, %193 : vector<64x128xf32>
    %cst_83 = arith.constant 0.000000e+00 : f32
    %195 = vector.broadcast %cst_83 : f32 to vector<64x128xf32>
    %196 = arith.maximumf %194, %195 : vector<64x128xf32>
    %197 = arith.truncf %196 : vector<64x128xf32> to vector<64x128xbf16>
    %c3_84 = arith.constant 3 : index
    %c0_85 = arith.constant 0 : index
    %c0_86 = arith.constant 0 : index
    %198 = vector.load %arg6[%c3_84, %c0_85, %c0_86] : memref<4x128x128xbf16, #tpu.memory_space<vmem>>, vector<1x128x128xbf16>
    %199 = vector.shape_cast %198 : vector<1x128x128xbf16> to vector<128x128xbf16>
    %cst_87 = arith.constant dense<0.000000e+00> : vector<64x128xf32>
    %200 = tpu.matmul %197, %199, %cst_87 {dimension_numbers = #tpu.dot_dimension_numbers<[1], [0], [0], [1], [0, 0, 1, 1], [], []>} : vector<64x128xbf16>, vector<128x128xbf16>, vector<64x128xf32> -> vector<64x128xf32>
    %201 = arith.addf %155, %200 : vector<64x128xf32>
    %c3_88 = arith.constant 3 : index
    %c0_89 = arith.constant 0 : index
    %202 = vector.load %arg7[%c3_88, %c0_89] : memref<4x128xf32, #tpu.memory_space<vmem>>, vector<1x128xf32>
    %203 = vector.shape_cast %202 : vector<1x128xf32> to vector<128xf32>
    %204 = vector.shape_cast %203 : vector<128xf32> to vector<1x128xf32>
    %205 = vector.broadcast %204 : vector<1x128xf32> to vector<64x128xf32>
    %206 = arith.addf %201, %205 : vector<64x128xf32>
    %207 = arith.truncf %206 : vector<64x128xf32> to vector<64x128xbf16>
    %c0_90 = arith.constant 0 : index
    %c0_91 = arith.constant 0 : index
    %208 = vector.load %arg8[%c0_90, %c0_91] : memref<128x4xbf16, #tpu.memory_space<vmem>>, vector<128x4xbf16>
    %cst_92 = arith.constant dense<0.000000e+00> : vector<64x4xf32>
    %209 = tpu.matmul %207, %208, %cst_92 {dimension_numbers = #tpu.dot_dimension_numbers<[1], [0], [0], [1], [0, 0, 1, 1], [], []>} : vector<64x128xbf16>, vector<128x4xbf16>, vector<64x4xf32> -> vector<64x4xf32>
    %210 = arith.truncf %209 : vector<64x4xf32> to vector<64x4xbf16>
    %c0_93 = arith.constant 0 : index
    %c0_94 = arith.constant 0 : index
    %211 = vector.load %arg9[%c0_93, %c0_94] : memref<32x32xbf16, #tpu.memory_space<vmem>>, vector<32x32xbf16>
    %c0_95 = arith.constant 0 : index
    %c0_96 = arith.constant 0 : index
    %212 = vector.load %arg10[%c0_95, %c0_96] : memref<4x32xf32, #tpu.memory_space<vmem>>, vector<4x32xf32>
    %213 = vector.extract_strided_slice %210 {offsets = [0, 0], sizes = [32, 4], strides = [1, 1]} : vector<64x4xbf16> to vector<32x4xbf16>
    %214 = tpu.transpose %213, [1, 0] : vector<32x4xbf16> -> vector<4x32xbf16>
    %cst_97 = arith.constant dense<0.000000e+00> : vector<4x32xf32>
    %215 = tpu.matmul %214, %211, %cst_97 {dimension_numbers = #tpu.dot_dimension_numbers<[1], [0], [0], [1], [0, 0, 1, 1], [], []>} : vector<4x32xbf16>, vector<32x32xbf16>, vector<4x32xf32> -> vector<4x32xf32>
    %216 = arith.addf %215, %212 : vector<4x32xf32>
    %217 = arith.mulf %216, %216 : vector<4x32xf32>
    %218 = vector.shape_cast %217 : vector<4x32xf32> to vector<1x4x32xf32>
    %cst_98 = arith.constant dense<0.000000e+00> : vector<1xf32>
    %219 = vector.multi_reduction <add>, %218, %cst_98 [1, 2] : vector<1x4x32xf32> to vector<1xf32>
    %220 = vector.shape_cast %219 : vector<1xf32> to vector<1x1x1xf32>
    %221 = vector.extract %220[0, 0, 0] : f32 from vector<1x1x1xf32>
    %cst_99 = arith.constant 1.000000e-24 : f32
    %222 = arith.maximumf %221, %cst_99 : f32
    %223 = math.rsqrt %222 : f32
    %224 = vector.broadcast %223 : f32 to vector<4x32xf32>
    %225 = arith.mulf %216, %224 : vector<4x32xf32>
    %c0_100 = arith.constant 0 : index
    %c0_101 = arith.constant 0 : index
    %c0_102 = arith.constant 0 : index
    %226 = vector.load %arg11[%c0_100, %c0_101, %c0_102] : memref<2x4x32xf32, #tpu.memory_space<vmem>>, vector<1x4x32xf32>
    %227 = vector.shape_cast %226 : vector<1x4x32xf32> to vector<4x32xf32>
    %228 = vector.shape_cast %225 : vector<4x32xf32> to vector<1x4x32xf32>
    tpu.vector_store %arg11[%c0_100, %c0_101, %c0_102], %228 {strides = array<i32>} : memref<2x4x32xf32, #tpu.memory_space<vmem>>, vector<1x4x32xf32>,
    %229 = vector.extract_strided_slice %210 {offsets = [32, 0], sizes = [32, 4], strides = [1, 1]} : vector<64x4xbf16> to vector<32x4xbf16>
    %230 = tpu.transpose %229, [1, 0] : vector<32x4xbf16> -> vector<4x32xbf16>
    %cst_103 = arith.constant dense<0.000000e+00> : vector<4x32xf32>
    %231 = tpu.matmul %230, %211, %cst_103 {dimension_numbers = #tpu.dot_dimension_numbers<[1], [0], [0], [1], [0, 0, 1, 1], [], []>} : vector<4x32xbf16>, vector<32x32xbf16>, vector<4x32xf32> -> vector<4x32xf32>
    %232 = arith.addf %231, %212 : vector<4x32xf32>
    %233 = arith.mulf %232, %232 : vector<4x32xf32>
    %234 = vector.shape_cast %233 : vector<4x32xf32> to vector<1x4x32xf32>
    %cst_104 = arith.constant dense<0.000000e+00> : vector<1xf32>
    %235 = vector.multi_reduction <add>, %234, %cst_104 [1, 2] : vector<1x4x32xf32> to vector<1xf32>
    %236 = vector.shape_cast %235 : vector<1xf32> to vector<1x1x1xf32>
    %237 = vector.extract %236[0, 0, 0] : f32 from vector<1x1x1xf32>
    %cst_105 = arith.constant 1.000000e-24 : f32
    %238 = arith.maximumf %237, %cst_105 : f32
    %239 = math.rsqrt %238 : f32
    %240 = vector.broadcast %239 : f32 to vector<4x32xf32>
    %241 = arith.mulf %232, %240 : vector<4x32xf32>
    %c1_106 = arith.constant 1 : index
    %c0_107 = arith.constant 0 : index
    %c0_108 = arith.constant 0 : index
    %242 = vector.load %arg11[%c1_106, %c0_107, %c0_108] : memref<2x4x32xf32, #tpu.memory_space<vmem>>, vector<1x4x32xf32>
    %243 = vector.shape_cast %242 : vector<1x4x32xf32> to vector<4x32xf32>
    %244 = vector.shape_cast %241 : vector<4x32xf32> to vector<1x4x32xf32>
    tpu.vector_store %arg11[%c1_106, %c0_107, %c0_108], %244 {strides = array<i32>} : memref<2x4x32xf32, #tpu.memory_space<vmem>>, vector<1x4x32xf32>,
    return
  }
  func.func @transform_0(%arg0: i32) -> (i32, i32, i32) {
    %c0_i32 = arith.constant 0 : i32
    %c0_i32_0 = arith.constant 0 : i32
    %c0_i32_1 = arith.constant 0 : i32
    return %arg0, %c0_i32, %c0_i32_0 : i32, i32, i32
  }
  func.func @transform_1(%arg0: i32) -> (i32, i32) {
    %c0_i32 = arith.constant 0 : i32
    %c0_i32_0 = arith.constant 0 : i32
    %c0_i32_1 = arith.constant 0 : i32
    return %c0_i32, %c0_i32_0 : i32, i32
  }
  func.func @transform_2(%arg0: i32) -> (i32, i32) {
    %c0_i32 = arith.constant 0 : i32
    %c0_i32_0 = arith.constant 0 : i32
    %c0_i32_1 = arith.constant 0 : i32
    return %c0_i32, %c0_i32_0 : i32, i32
  }
  func.func @transform_3(%arg0: i32) -> (i32, i32, i32) {
    %c0_i32 = arith.constant 0 : i32
    %c0_i32_0 = arith.constant 0 : i32
    %c0_i32_1 = arith.constant 0 : i32
    %c0_i32_2 = arith.constant 0 : i32
    return %c0_i32, %c0_i32_0, %c0_i32_1 : i32, i32, i32
  }
  func.func @transform_4(%arg0: i32) -> (i32, i32) {
    %c0_i32 = arith.constant 0 : i32
    %c0_i32_0 = arith.constant 0 : i32
    %c0_i32_1 = arith.constant 0 : i32
    return %c0_i32, %c0_i32_0 : i32, i32
  }
  func.func @transform_5(%arg0: i32) -> (i32, i32, i32) {
    %c0_i32 = arith.constant 0 : i32
    %c0_i32_0 = arith.constant 0 : i32
    %c0_i32_1 = arith.constant 0 : i32
    %c0_i32_2 = arith.constant 0 : i32
    return %c0_i32, %c0_i32_0, %c0_i32_1 : i32, i32, i32
  }
  func.func @transform_6(%arg0: i32) -> (i32, i32) {
    %c0_i32 = arith.constant 0 : i32
    %c0_i32_0 = arith.constant 0 : i32
    %c0_i32_1 = arith.constant 0 : i32
    return %c0_i32, %c0_i32_0 : i32, i32
  }
  func.func @transform_7(%arg0: i32) -> (i32, i32) {
    %c0_i32 = arith.constant 0 : i32
    %c0_i32_0 = arith.constant 0 : i32
    %c0_i32_1 = arith.constant 0 : i32
    return %c0_i32, %c0_i32_0 : i32, i32
  }
  func.func @transform_8(%arg0: i32) -> (i32, i32) {
    %c0_i32 = arith.constant 0 : i32
    %c0_i32_0 = arith.constant 0 : i32
    %c0_i32_1 = arith.constant 0 : i32
    return %c0_i32, %c0_i32_0 : i32, i32
  }
  func.func @transform_9(%arg0: i32) -> (i32, i32) {
    %c0_i32 = arith.constant 0 : i32
    %c0_i32_0 = arith.constant 0 : i32
    %c0_i32_1 = arith.constant 0 : i32
    return %c0_i32, %c0_i32_0 : i32, i32
  }
  func.func @transform_10(%arg0: i32) -> (i32, i32, i32) {
    %c0_i32 = arith.constant 0 : i32
    %c0_i32_0 = arith.constant 0 : i32
    %c0_i32_1 = arith.constant 0 : i32
    return %arg0, %c0_i32, %c0_i32_0 : i32, i32, i32
  }
}

</mosaic_0001>

<llo_original>
// kernel: tpu_custom_call.1
$region0: #{tpu_custom_call.1}
  #allocation0 [shape = 'u32[]', space=smem, size = 0x4, offset = 0x4, fixed_abs, tag = 'smem constant byte address 0x4 - core index']
  #allocation1 [shape = 'u32[144,128]{1,0:T(1,128)}', space=vmem, size = 0x12000, scoped, tag = 'internal scratch']
  %s0 = inlined_call_operand.vmem [shape: bf16[2,32,128], index: 0, kind: input, shape index: {}]
  %s1 = inlined_call_operand.vmem [shape: f32[4,128], index: 1, kind: input, shape index: {}]
  %s2 = inlined_call_operand.vmem [shape: f32[4,128], index: 2, kind: input, shape index: {}]
  %s3 = inlined_call_operand.hbm [shape: bf16[4,128,128], index: 3, kind: input, shape index: {}]
  %s4 = inlined_call_operand.vmem [shape: f32[4,128], index: 4, kind: input, shape index: {}]
  %s5 = inlined_call_operand.hbm [shape: bf16[4,128,128], index: 5, kind: input, shape index: {}]
  %s6 = inlined_call_operand.vmem [shape: f32[4,128], index: 6, kind: input, shape index: {}]
  %s7 = inlined_call_operand.vmem [shape: bf16[128,4], index: 7, kind: input, shape index: {}]
  %s8 = inlined_call_operand.vmem [shape: bf16[32,32], index: 8, kind: input, shape index: {}]
  %s9 = inlined_call_operand.vmem [shape: f32[4,32], index: 9, kind: input, shape index: {}]
  %s10 = inlined_call_operand.hbm [shape: f32[2,4,32], index: 10, kind: output, shape index: {}]
  %s11 = sld [smem:[#allocation0]]
  $region58: #{tpu_custom_call.1} parent=0
    _
  %s13 = ssub.s32 1, %s11
  %s14 = scalar_select 0, %s13, %s11
  $region1: #{tpu_custom_call.1} parent=0
    #allocation2 [shape = 'u8[131072]{0}', space=vmem, size = 0x20000, scoped, tag = 'input window, operand 3, single buffered']
    #allocation3 [shape = 's32[1]{0}', space=sflag, size = 0x4, scoped, tag = 'scoped memory for tpu_custom_call.1']
    #allocation4 [shape = 's32[1]{0}', space=sflag, size = 0x4, scoped, tag = 'scoped memory for tpu_custom_call.1']
    #allocation5 [shape = 'u8[131072]{0}', space=vmem, size = 0x20000, scoped, tag = 'input window, operand 5, single buffered']
    #allocation6 [shape = 's32[1]{0}', space=sflag, size = 0x4, scoped, tag = 'scoped memory for tpu_custom_call.1']
    #allocation7 [shape = 'u8[4096]{0}', space=vmem, size = 0x1000, scoped, tag = 'output window, operand 0, single buffered']
    %15 = vsyncpa [#allocation3], 0
    %16 = vsyncpa [#allocation6], 0
    %17 = vsyncpa [#allocation4], 0
    // Predicated region
    $region2: #{tpu_custom_call.1} parent=1 // pred_check
      _
    $region3: #{tpu_custom_call.1} parent=1 // pred_check_branch
      %19 = sbr.rel (0) target = $region5
    $region4: #{tpu_custom_call.1} parent=1 // pred_region
      _
    $region5: #{tpu_custom_call.1} parent=1 // pred_fallthru
      _
    // Predicated region
    $region6: #{tpu_custom_call.1} parent=1 // pred_check
      _
    $region7: #{tpu_custom_call.1} parent=1 // pred_check_branch
      %21 = sbr.rel (0) target = $region9
    $region8: #{tpu_custom_call.1} parent=1 // pred_region
      _
    $region9: #{tpu_custom_call.1} parent=1 // pred_fallthru
      _
    // Predicated region
    $region10: #{tpu_custom_call.1} parent=1 // pred_check
      _
    $region11: #{tpu_custom_call.1} parent=1 // pred_check_branch
      %23 = sbr.rel (0) target = $region13
    $region12: #{tpu_custom_call.1} parent=1 // pred_region
      _
    $region13: #{tpu_custom_call.1} parent=1 // pred_fallthru
      _
    // Predicated region
    $region14: #{tpu_custom_call.1} parent=1 // pred_check
      _
    $region15: #{tpu_custom_call.1} parent=1 // pred_check_branch
      %25 = sbr.rel (0) target = $region17
    $region16: #{tpu_custom_call.1} parent=1 // pred_region
      %s27 = ssub.s32 4096, 4096
      %28 = vsyncadd [#allocation3], %s27
      %s29 = sshll.u32 [#allocation2], 4
      %s30 = int_to_ptr.vmem [resolvable:$true] %s29
      %35 = dma.hbm_to_vmem [thread:$0]  %s3, 4096, %s30, [#allocation3], 64, 64, 4
    $region17: #{tpu_custom_call.1} parent=1 // pred_fallthru
      _
    // Predicated region
    $region18: #{tpu_custom_call.1} parent=1 // pred_check
      _
    $region19: #{tpu_custom_call.1} parent=1 // pred_check_branch
      %37 = sbr.rel (0) target = $region21
    $region20: #{tpu_custom_call.1} parent=1 // pred_region
      _
    $region21: #{tpu_custom_call.1} parent=1 // pred_fallthru
      _
    // Predicated region
    $region22: #{tpu_custom_call.1} parent=1 // pred_check
      _
    $region23: #{tpu_custom_call.1} parent=1 // pred_check_branch
      %39 = sbr.rel (0) target = $region25
    $region24: #{tpu_custom_call.1} parent=1 // pred_region
      %s41 = ssub.s32 4096, 4096
      %42 = vsyncadd [#allocation6], %s41
      %s43 = sshll.u32 [#allocation5], 4
      %s44 = int_to_ptr.vmem [resolvable:$true] %s43
      %49 = dma.hbm_to_vmem [thread:$0]  %s5, 4096, %s44, [#allocation6], 64, 64, 4
    $region25: #{tpu_custom_call.1} parent=1 // pred_fallthru
      _
    // Predicated region
    $region26: #{tpu_custom_call.1} parent=1 // pred_check
      _
    $region27: #{tpu_custom_call.1} parent=1 // pred_check_branch
      %51 = sbr.rel (0) target = $region29
    $region28: #{tpu_custom_call.1} parent=1 // pred_region
      _
    $region29: #{tpu_custom_call.1} parent=1 // pred_fallthru
      _
    // Predicated region
    $region30: #{tpu_custom_call.1} parent=1 // pred_check
      _
    $region31: #{tpu_custom_call.1} parent=1 // pred_check_branch
      %53 = sbr.rel (0) target = $region33
    $region32: #{tpu_custom_call.1} parent=1 // pred_region
      _
    $region33: #{tpu_custom_call.1} parent=1 // pred_fallthru
      _
    // Predicated region
    $region34: #{tpu_custom_call.1} parent=1 // pred_check
      _
    $region35: #{tpu_custom_call.1} parent=1 // pred_check_branch
      %55 = sbr.rel (0) target = $region37
    $region36: #{tpu_custom_call.1} parent=1 // pred_region
      _
    $region37: #{tpu_custom_call.1} parent=1 // pred_fallthru
      _
    // Predicated region
    $region38: #{tpu_custom_call.1} parent=1 // pred_check
      _
    $region39: #{tpu_custom_call.1} parent=1 // pred_check_branch
      %57 = sbr.rel (0) target = $region41
    $region40: #{tpu_custom_call.1} parent=1 // pred_region
      _
    $region41: #{tpu_custom_call.1} parent=1 // pred_fallthru
      _
    // Predicated region
    $region42: #{tpu_custom_call.1} parent=1 // pred_check
      _
    $region43: #{tpu_custom_call.1} parent=1 // pred_check_branch
      %59 = sbr.rel (0) target = $region45
    $region44: #{tpu_custom_call.1} parent=1 // pred_region
      %60 = dma.done [#allocation3], 4096
    $region45: #{tpu_custom_call.1} parent=1 // pred_fallthru
      _
    // Predicated region
    $region46: #{tpu_custom_call.1} parent=1 // pred_check
      _
    $region47: #{tpu_custom_call.1} parent=1 // pred_check_branch
      %62 = sbr.rel (0) target = $region49
    $region48: #{tpu_custom_call.1} parent=1 // pred_region
      %63 = dma.done [#allocation6], 4096
    $region49: #{tpu_custom_call.1} parent=1 // pred_fallthru
      _
    %v65 = vld [vmem:[%s0] sm:$0xf]
    %v66 = vld [vmem:[%s0 + $0x4] sm:$0xf]
    %v67 = vld [vmem:[%s0 + $0x8] sm:$0xf]
    %v68 = vld [vmem:[%s0 + $0xc] sm:$0xf]
    %v69 = vld [vmem:[%s0 + $0x10] sm:$0xf]
    %v70 = vld [vmem:[%s0 + $0x14] sm:$0xf]
    %v71 = vld [vmem:[%s0 + $0x18] sm:$0xf]
    %v72 = vld [vmem:[%s0 + $0x1c] sm:$0xf]
    %v73 = vunpack.c.l.bf16 %v65
    %v74 = vunpack.c.l.bf16 %v66
    %v75 = vunpack.c.l.bf16 %v67
    %v76 = vunpack.c.l.bf16 %v68
    %v77 = vunpack.c.l.bf16 %v69
    %v78 = vunpack.c.l.bf16 %v70
    %v79 = vunpack.c.l.bf16 %v71
    %v80 = vunpack.c.l.bf16 %v72
    %v81 = vld [vmem:[%s1] sm:$0x1]
    %v82 = vld [vmem:[%s2] sm:$0x1]
    %83 = vadd.xlane.f32.xlu0 %v73
    %v84 = vpop.xlane.xlu0 %83
    %85 = vadd.xlane.f32.xlu0 %v74
    %v86 = vpop.xlane.xlu0 %85
    %87 = vadd.xlane.f32.xlu0 %v75
    %v88 = vpop.xlane.xlu0 %87
    %89 = vadd.xlane.f32.xlu0 %v76
    %v90 = vpop.xlane.xlu0 %89
    %91 = vadd.xlane.f32.xlu0 %v77
    %v92 = vpop.xlane.xlu0 %91
    %93 = vadd.xlane.f32.xlu0 %v78
    %v94 = vpop.xlane.xlu0 %93
    %95 = vadd.xlane.f32.xlu0 %v79
    %v96 = vpop.xlane.xlu0 %95
    %97 = vadd.xlane.f32.xlu0 %v80
    %v98 = vpop.xlane.xlu0 %97
    %v99 = vmul.f32 %v73, %v73
    %v100 = vmul.f32 %v74, %v74
    %v101 = vmul.f32 %v75, %v75
    %v102 = vmul.f32 %v76, %v76
    %v103 = vmul.f32 %v77, %v77
    %v104 = vmul.f32 %v78, %v78
    %v105 = vmul.f32 %v79, %v79
    %v106 = vmul.f32 %v80, %v80
    %107 = vadd.xlane.f32.xlu0 %v99
    %v108 = vpop.xlane.xlu0 %107
    %109 = vadd.xlane.f32.xlu0 %v100
    %v110 = vpop.xlane.xlu0 %109
    %111 = vadd.xlane.f32.xlu0 %v101
    %v112 = vpop.xlane.xlu0 %111
    %113 = vadd.xlane.f32.xlu0 %v102
    %v114 = vpop.xlane.xlu0 %113
    %115 = vadd.xlane.f32.xlu0 %v103
    %v116 = vpop.xlane.xlu0 %115
    %117 = vadd.xlane.f32.xlu0 %v104
    %v118 = vpop.xlane.xlu0 %117
    %119 = vadd.xlane.f32.xlu0 %v105
    %v120 = vpop.xlane.xlu0 %119
    %121 = vadd.xlane.f32.xlu0 %v106
    %v122 = vpop.xlane.xlu0 %121
    %v123 = vmul.f32 %v84, 0.0625
    %v124 = vmul.f32 %v86, 0.0625
    %v125 = vmul.f32 %v88, 0.0625
    %v126 = vmul.f32 %v90, 0.0625
    %v127 = vmul.f32 %v92, 0.0625
    %v128 = vmul.f32 %v94, 0.0625
    %v129 = vmul.f32 %v96, 0.0625
    %v130 = vmul.f32 %v98, 0.0625
    %v131 = vmul.f32 %v108, 0.0625
    %v132 = vmul.f32 %v110, 0.0625
    %v133 = vmul.f32 %v112, 0.0625
    %v134 = vmul.f32 %v114, 0.0625
    %v135 = vmul.f32 %v116, 0.0625
    %v136 = vmul.f32 %v118, 0.0625
    %v137 = vmul.f32 %v120, 0.0625
    %v138 = vmul.f32 %v122, 0.0625
    %v139 = vmul.f32 %v123, %v123
    %v140 = vmul.f32 %v124, %v124
    %v141 = vmul.f32 %v125, %v125
    %v142 = vmul.f32 %v126, %v126
    %v143 = vmul.f32 %v127, %v127
    %v144 = vmul.f32 %v128, %v128
    %v145 = vmul.f32 %v129, %v129
    %v146 = vmul.f32 %v130, %v130
    %v147 = vsub.f32 %v131, %v139
    %v148 = vsub.f32 %v132, %v140
    %v149 = vsub.f32 %v133, %v141
    %v150 = vsub.f32 %v134, %v142
    %v151 = vsub.f32 %v135, %v143
    %v152 = vsub.f32 %v136, %v144
    %v153 = vsub.f32 %v137, %v145
    %v154 = vsub.f32 %v138, %v146
    %v155 = vmax.f32 %v147, 0.0
    %v156 = vmax.f32 %v148, 0.0
    %v157 = vmax.f32 %v149, 0.0
    %v158 = vmax.f32 %v150, 0.0
    %v159 = vmax.f32 %v151, 0.0
    %v160 = vmax.f32 %v152, 0.0
    %v161 = vmax.f32 %v153, 0.0
    %v162 = vmax.f32 %v154, 0.0
    %v163 = vsub.f32 %v73, %v123
    %v164 = vsub.f32 %v74, %v124
    %v165 = vsub.f32 %v75, %v125
    %v166 = vsub.f32 %v76, %v126
    %v167 = vsub.f32 %v77, %v127
    %v168 = vsub.f32 %v78, %v128
    %v169 = vsub.f32 %v79, %v129
    %v170 = vsub.f32 %v80, %v130
    %v171 = vadd.f32 %v155, 1e-05
    %v172 = vadd.f32 %v156, 1e-05
    %v173 = vadd.f32 %v157, 1e-05
    %v174 = vadd.f32 %v158, 1e-05
    %v175 = vadd.f32 %v159, 1e-05
    %v176 = vadd.f32 %v160, 1e-05
    %v177 = vadd.f32 %v161, 1e-05
    %v178 = vadd.f32 %v162, 1e-05
    %v179 = vrsqrt.pop %v171
    %v180 = vrsqrt.pop %v172
    %v181 = vrsqrt.pop %v173
    %v182 = vrsqrt.pop %v174
    %v183 = vrsqrt.pop %v175
    %v184 = vrsqrt.pop %v176
    %v185 = vrsqrt.pop %v177
    %v186 = vrsqrt.pop %v178
    %v187 = vmul.f32 %v163, %v179
    %v188 = vmul.f32 %v164, %v180
    %v189 = vmul.f32 %v165, %v181
    %v190 = vmul.f32 %v166, %v182
    %v191 = vmul.f32 %v167, %v183
    %v192 = vmul.f32 %v168, %v184
    %v193 = vmul.f32 %v169, %v185
    %v194 = vmul.f32 %v170, %v186
    %v195 = vlaneseq
    %v196 = vshrl.u32 %v195, 7
    %v197 = vsub.s32 0, %v196
    %v198 = vrot.slane %v81, %v197
    %v199 = vmul.f32 %v187, %v198
    %v200 = vmul.f32 %v188, %v198
    %v201 = vmul.f32 %v189, %v198
    %v202 = vmul.f32 %v190, %v198
    %v203 = vmul.f32 %v191, %v198
    %v204 = vmul.f32 %v192, %v198
    %v205 = vmul.f32 %v193, %v198
    %v206 = vmul.f32 %v194, %v198
    %v207 = vlaneseq
    %v208 = vshrl.u32 %v207, 7
    %v209 = vsub.s32 0, %v208
    %v210 = vrot.slane %v82, %v209
    %v211 = vadd.f32 %v199, %v210
    %v212 = vadd.f32 %v200, %v210
    %v213 = vadd.f32 %v201, %v210
    %v214 = vadd.f32 %v202, %v210
    %v215 = vadd.f32 %v203, %v210
    %v216 = vadd.f32 %v204, %v210
    %v217 = vadd.f32 %v205, %v210
    %v218 = vadd.f32 %v206, %v210
    %v219 = vpack.c.bf16 %v212, %v211
    %v220 = vpack.c.bf16 %v214, %v213
    %v221 = vpack.c.bf16 %v216, %v215
    %v222 = vpack.c.bf16 %v218, %v217
    %v223 = vld [vmem:[#allocation2] sm:$0xf]
    %v224 = vld [vmem:[#allocation2 + $0x4] sm:$0xf]
    %v225 = vld [vmem:[#allocation2 + $0x8] sm:$0xf]
    %v226 = vld [vmem:[#allocation2 + $0xc] sm:$0xf]
    %v227 = vld [vmem:[#allocation2 + $0x10] sm:$0xf]
    %v228 = vld [vmem:[#allocation2 + $0x14] sm:$0xf]
    %v229 = vld [vmem:[#allocation2 + $0x18] sm:$0xf]
    %v230 = vld [vmem:[#allocation2 + $0x1c] sm:$0xf]
    %v231 = vld [vmem:[#allocation2 + $0x20] sm:$0xf]
    %v232 = vld [vmem:[#allocation2 + $0x24] sm:$0xf]
    %v233 = vld [vmem:[#allocation2 + $0x28] sm:$0xf]
    %v234 = vld [vmem:[#allocation2 + $0x2c] sm:$0xf]
    %v235 = vld [vmem:[#allocation2 + $0x30] sm:$0xf]
    %v236 = vld [vmem:[#allocation2 + $0x34] sm:$0xf]
    %v237 = vld [vmem:[#allocation2 + $0x38] sm:$0xf]
    %v238 = vld [vmem:[#allocation2 + $0x3c] sm:$0xf]
    %v239 = vld [vmem:[%s4] sm:$0x1]
    %v240 = vlaneseq
    %v241 = vshrl.u32 %v240, 7
    %v242 = vsub.s32 0, %v241
    %v243 = vrot.slane %v239, %v242
    %v260 = vunpack.c.l.b16 %v223
    %v261 = vunpack.c.l.b16 %v224
    %v262 = vunpack.c.l.b16 %v225
    %v263 = vunpack.c.l.b16 %v226
    %v264 = vunpack.c.l.b16 %v227
    %v265 = vunpack.c.l.b16 %v228
    %v266 = vunpack.c.l.b16 %v229
    %v267 = vunpack.c.l.b16 %v230
    %v268 = vunpack.c.l.b16 %v231
    %v269 = vunpack.c.l.b16 %v232
    %v270 = vunpack.c.l.b16 %v233
    %v271 = vunpack.c.l.b16 %v234
    %v272 = vunpack.c.l.b16 %v235
    %v273 = vunpack.c.l.b16 %v236
    %v274 = vunpack.c.l.b16 %v237
    %v275 = vunpack.c.l.b16 %v238
    %v276 = vpack.c.b16 %v261, %v260
    %v277 = vpack.c.b16 %v263, %v262
    %v278 = vpack.c.b16 %v265, %v264
    %v279 = vpack.c.b16 %v267, %v266
    %v280 = vpack.c.b16 %v269, %v268
    %v281 = vpack.c.b16 %v271, %v270
    %v282 = vpack.c.b16 %v273, %v272
    %v283 = vpack.c.b16 %v275, %v274
    %292 = vmatprep.subr.bf16.mxu0 0
    %293 = vmatpush1.bf16.msra.mxu0 %v283
    %294 = vmatprep.subr.bf16.mxu0 0
    %295 = vmatpush1.bf16.msra.mxu0 %v282
    %296 = vmatprep.subr.bf16.mxu0 0
    %297 = vmatpush1.bf16.msra.mxu0 %v281
    %298 = vmatprep.subr.bf16.mxu0 0
    %299 = vmatpush1.bf16.msra.mxu0 %v280
    %300 = vmatprep.subr.bf16.mxu0 0
    %301 = vmatpush1.bf16.msra.mxu0 %v279
    %302 = vmatprep.subr.bf16.mxu0 0
    %303 = vmatpush1.bf16.msra.mxu0 %v278
    %304 = vmatprep.subr.bf16.mxu0 0
    %305 = vmatpush1.bf16.msra.mxu0 %v277
    %306 = vmatprep.subr.bf16.mxu0 0
    %307 = vmatpush1.bf16.msra.mxu0 %v276
    %308 = vmatprep.subr.bf16.mxu0 0
    %309 = vmatpush2.bf16.msra.mxu0 0
    %310 = vmatprep.subr.bf16.mxu0 0
    %311 = vmatpush2.bf16.msra.mxu0 0
    %312 = vmatprep.subr.bf16.mxu0 0
    %313 = vmatpush2.bf16.msra.mxu0 0
    %314 = vmatprep.subr.bf16.mxu0 0
    %315 = vmatpush2.bf16.msra.mxu0 0
    %316 = vmatprep.subr.bf16.mxu0 0
    %317 = vmatpush2.bf16.msra.mxu0 0
    %318 = vmatprep.subr.bf16.mxu0 0
    %319 = vmatpush2.bf16.msra.mxu0 0
    %320 = vmatprep.subr.bf16.mxu0 0
    %321 = vmatpush2.bf16.msra.mxu0 0
    %322 = vmatprep.subr.bf16.mxu0 0
    %323 = vmatpush2.bf16.msra.mxu0 0
    %324 = vmatprep.mubr.bf16.mxu0 0
    %325 = vmatmul.mubr.bf16.gmra.mxu0 %v219
    %v326 = vpop.f32.mrf.mxu0
    %v327 = vadd.f32 %v243, %v326
    %v328 = vpop.f32.mrf.mxu0
    %v329 = vpop.f32.mrf.mxu0
    %v330 = vadd.f32 %v243, %v329
    %v331 = vpop.f32.mrf.mxu0
    %332 = vmatprep.mubr.bf16.mxu0 0
    %333 = vmatmul.mubr.bf16.gmra.mxu0 %v220
    %v334 = vpop.f32.mrf.mxu0
    %v335 = vadd.f32 %v243, %v334
    %v336 = vpop.f32.mrf.mxu0
    %v337 = vpop.f32.mrf.mxu0
    %v338 = vadd.f32 %v243, %v337
    %v339 = vpop.f32.mrf.mxu0
    %340 = vmatprep.mubr.bf16.mxu0 0
    %341 = vmatmul.mubr.bf16.gmra.mxu0 %v221
    %v342 = vpop.f32.mrf.mxu0
    %v343 = vadd.f32 %v243, %v342
    %v344 = vpop.f32.mrf.mxu0
    %v345 = vpop.f32.mrf.mxu0
    %v346 = vadd.f32 %v243, %v345
    %v347 = vpop.f32.mrf.mxu0
    %348 = vmatprep.mubr.bf16.mxu0 0
    %349 = vmatmul.mubr.bf16.gmra.mxu0 %v222
    %v350 = vpop.f32.mrf.mxu0
    %v351 = vadd.f32 %v243, %v350
    %v352 = vpop.f32.mrf.mxu0
    %v353 = vpop.f32.mrf.mxu0
    %v354 = vadd.f32 %v243, %v353
    %v355 = vpop.f32.mrf.mxu0
    %356 = vdwg.mxu0
    %v357 = vmax.f32 %v327, 0.0
    %v358 = vmax.f32 %v330, 0.0
    %v359 = vmax.f32 %v335, 0.0
    %v360 = vmax.f32 %v338, 0.0
    %v361 = vmax.f32 %v343, 0.0
    %v362 = vmax.f32 %v346, 0.0
    %v363 = vmax.f32 %v351, 0.0
    %v364 = vmax.f32 %v354, 0.0
    %v365 = vpack.c.bf16 %v358, %v357
    %v366 = vpack.c.bf16 %v360, %v359
    %v367 = vpack.c.bf16 %v362, %v361
    %v368 = vpack.c.bf16 %v364, %v363
    %v369 = vld [vmem:[#allocation5] sm:$0xf]
    %v370 = vld [vmem:[#allocation5 + $0x4] sm:$0xf]
    %v371 = vld [vmem:[#allocation5 + $0x8] sm:$0xf]
    %v372 = vld [vmem:[#allocation5 + $0xc] sm:$0xf]
    %v373 = vld [vmem:[#allocation5 + $0x10] sm:$0xf]
    %v374 = vld [vmem:[#allocation5 + $0x14] sm:$0xf]
    %v375 = vld [vmem:[#allocation5 + $0x18] sm:$0xf]
    %v376 = vld [vmem:[#allocation5 + $0x1c] sm:$0xf]
    %v377 = vld [vmem:[#allocation5 + $0x20] sm:$0xf]
    %v378 = vld [vmem:[#allocation5 + $0x24] sm:$0xf]
    %v379 = vld [vmem:[#allocation5 + $0x28] sm:$0xf]
    %v380 = vld [vmem:[#allocation5 + $0x2c] sm:$0xf]
    %v381 = vld [vmem:[#allocation5 + $0x30] sm:$0xf]
    %v382 = vld [vmem:[#allocation5 + $0x34] sm:$0xf]
    %v383 = vld [vmem:[#allocation5 + $0x38] sm:$0xf]
    %v384 = vld [vmem:[#allocation5 + $0x3c] sm:$0xf]
    %v401 = vunpack.c.l.b16 %v369
    %v402 = vunpack.c.l.b16 %v370
    %v403 = vunpack.c.l.b16 %v371
    %v404 = vunpack.c.l.b16 %v372
    %v405 = vunpack.c.l.b16 %v373
    %v406 = vunpack.c.l.b16 %v374
    %v407 = vunpack.c.l.b16 %v375
    %v408 = vunpack.c.l.b16 %v376
    %v409 = vunpack.c.l.b16 %v377
    %v410 = vunpack.c.l.b16 %v378
    %v411 = vunpack.c.l.b16 %v379
    %v412 = vunpack.c.l.b16 %v380
    %v413 = vunpack.c.l.b16 %v381
    %v414 = vunpack.c.l.b16 %v382
    %v415 = vunpack.c.l.b16 %v383
    %v416 = vunpack.c.l.b16 %v384
    %v417 = vpack.c.b16 %v402, %v401
    %v418 = vpack.c.b16 %v404, %v403
    %v419 = vpack.c.b16 %v406, %v405
    %v420 = vpack.c.b16 %v408, %v407
    %v421 = vpack.c.b16 %v410, %v409
    %v422 = vpack.c.b16 %v412, %v411
    %v423 = vpack.c.b16 %v414, %v413
    %v424 = vpack.c.b16 %v416, %v415
    %433 = vmatprep.subr.bf16.mxu0 0
    %434 = vmatpush1.bf16.msra.mxu0 %v424
    %435 = vmatprep.subr.bf16.mxu0 0
    %436 = vmatpush1.bf16.msra.mxu0 %v423
    %437 = vmatprep.subr.bf16.mxu0 0
    %438 = vmatpush1.bf16.msra.mxu0 %v422
    %439 = vmatprep.subr.bf16.mxu0 0
    %440 = vmatpush1.bf16.msra.mxu0 %v421
    %441 = vmatprep.subr.bf16.mxu0 0
    %442 = vmatpush1.bf16.msra.mxu0 %v420
    %443 = vmatprep.subr.bf16.mxu0 0
    %444 = vmatpush1.bf16.msra.mxu0 %v419
    %445 = vmatprep.subr.bf16.mxu0 0
    %446 = vmatpush1.bf16.msra.mxu0 %v418
    %447 = vmatprep.subr.bf16.mxu0 0
    %448 = vmatpush1.bf16.msra.mxu0 %v417
    %449 = vmatprep.subr.bf16.mxu0 0
    %450 = vmatpush2.bf16.msra.mxu0 0
    %451 = vmatprep.subr.bf16.mxu0 0
    %452 = vmatpush2.bf16.msra.mxu0 0
    %453 = vmatprep.subr.bf16.mxu0 0
    %454 = vmatpush2.bf16.msra.mxu0 0
    %455 = vmatprep.subr.bf16.mxu0 0
    %456 = vmatpush2.bf16.msra.mxu0 0
    %457 = vmatprep.subr.bf16.mxu0 0
    %458 = vmatpush2.bf16.msra.mxu0 0
    %459 = vmatprep.subr.bf16.mxu0 0
    %460 = vmatpush2.bf16.msra.mxu0 0
    %461 = vmatprep.subr.bf16.mxu0 0
    %462 = vmatpush2.bf16.msra.mxu0 0
    %463 = vmatprep.subr.bf16.mxu0 0
    %464 = vmatpush2.bf16.msra.mxu0 0
    %465 = vmatprep.mubr.bf16.mxu0 0
    %466 = vmatmul.mubr.bf16.gmra.mxu0 %v365
    %v467 = vpop.f32.mrf.mxu0
    %v468 = vadd.f32 0.0, %v467
    %v469 = vpop.f32.mrf.mxu0
    %v470 = vpop.f32.mrf.mxu0
    %v471 = vadd.f32 0.0, %v470
    %v472 = vpop.f32.mrf.mxu0
    %473 = vmatprep.mubr.bf16.mxu0 0
    %474 = vmatmul.mubr.bf16.gmra.mxu0 %v366
    %v475 = vpop.f32.mrf.mxu0
    %v476 = vadd.f32 0.0, %v475
    %v477 = vpop.f32.mrf.mxu0
    %v478 = vpop.f32.mrf.mxu0
    %v479 = vadd.f32 0.0, %v478
    %v480 = vpop.f32.mrf.mxu0
    %481 = vmatprep.mubr.bf16.mxu0 0
    %482 = vmatmul.mubr.bf16.gmra.mxu0 %v367
    %v483 = vpop.f32.mrf.mxu0
    %v484 = vadd.f32 0.0, %v483
    %v485 = vpop.f32.mrf.mxu0
    %v486 = vpop.f32.mrf.mxu0
    %v487 = vadd.f32 0.0, %v486
    %v488 = vpop.f32.mrf.mxu0
    %489 = vmatprep.mubr.bf16.mxu0 0
    %490 = vmatmul.mubr.bf16.gmra.mxu0 %v368
    %v491 = vpop.f32.mrf.mxu0
    %v492 = vadd.f32 0.0, %v491
    %v493 = vpop.f32.mrf.mxu0
    %v494 = vpop.f32.mrf.mxu0
    %v495 = vadd.f32 0.0, %v494
    %v496 = vpop.f32.mrf.mxu0
    %497 = vdwg.mxu0
    %v498 = vadd.f32 %v73, %v468
    %v499 = vadd.f32 %v74, %v471
    %v500 = vadd.f32 %v75, %v476
    %v501 = vadd.f32 %v76, %v479
    %v502 = vadd.f32 %v77, %v484
    %v503 = vadd.f32 %v78, %v487
    %v504 = vadd.f32 %v79, %v492
    %v505 = vadd.f32 %v80, %v495
    %v506 = vld [vmem:[%s6] sm:$0x1]
    %v507 = vlaneseq
    %v508 = vshrl.u32 %v507, 7
    %v509 = vsub.s32 0, %v508
    %v510 = vrot.slane %v506, %v509
    %v511 = vadd.f32 %v498, %v510
    %v512 = vadd.f32 %v499, %v510
    %v513 = vadd.f32 %v500, %v510
    %v514 = vadd.f32 %v501, %v510
    %v515 = vadd.f32 %v502, %v510
    %v516 = vadd.f32 %v503, %v510
    %v517 = vadd.f32 %v504, %v510
    %v518 = vadd.f32 %v505, %v510
    %v519 = vld [vmem:[%s1 + $0x1] sm:$0x1]
    %v520 = vld [vmem:[%s2 + $0x1] sm:$0x1]
    %521 = vadd.xlane.f32.xlu0 %v511
    %v522 = vpop.xlane.xlu0 %521
    %523 = vadd.xlane.f32.xlu0 %v512
    %v524 = vpop.xlane.xlu0 %523
    %525 = vadd.xlane.f32.xlu0 %v513
    %v526 = vpop.xlane.xlu0 %525
    %527 = vadd.xlane.f32.xlu0 %v514
    %v528 = vpop.xlane.xlu0 %527
    %529 = vadd.xlane.f32.xlu0 %v515
    %v530 = vpop.xlane.xlu0 %529
    %531 = vadd.xlane.f32.xlu0 %v516
    %v532 = vpop.xlane.xlu0 %531
    %533 = vadd.xlane.f32.xlu0 %v517
    %v534 = vpop.xlane.xlu0 %533
    %535 = vadd.xlane.f32.xlu0 %v518
    %v536 = vpop.xlane.xlu0 %535
    %v537 = vmul.f32 %v511, %v511
    %v538 = vmul.f32 %v512, %v512
    %v539 = vmul.f32 %v513, %v513
    %v540 = vmul.f32 %v514, %v514
    %v541 = vmul.f32 %v515, %v515
    %v542 = vmul.f32 %v516, %v516
    %v543 = vmul.f32 %v517, %v517
    %v544 = vmul.f32 %v518, %v518
    %545 = vadd.xlane.f32.xlu0 %v537
    %v546 = vpop.xlane.xlu0 %545
    %547 = vadd.xlane.f32.xlu0 %v538
    %v548 = vpop.xlane.xlu0 %547
    %549 = vadd.xlane.f32.xlu0 %v539
    %v550 = vpop.xlane.xlu0 %549
    %551 = vadd.xlane.f32.xlu0 %v540
    %v552 = vpop.xlane.xlu0 %551
    %553 = vadd.xlane.f32.xlu0 %v541
    %v554 = vpop.xlane.xlu0 %553
    %555 = vadd.xlane.f32.xlu0 %v542
    %v556 = vpop.xlane.xlu0 %555
    %557 = vadd.xlane.f32.xlu0 %v543
    %v558 = vpop.xlane.xlu0 %557
    %559 = vadd.xlane.f32.xlu0 %v544
    %v560 = vpop.xlane.xlu0 %559
    %v561 = vmul.f32 %v522, 0.0625
    %v562 = vmul.f32 %v524, 0.0625
    %v563 = vmul.f32 %v526, 0.0625
    %v564 = vmul.f32 %v528, 0.0625
    %v565 = vmul.f32 %v530, 0.0625
    %v566 = vmul.f32 %v532, 0.0625
    %v567 = vmul.f32 %v534, 0.0625
    %v568 = vmul.f32 %v536, 0.0625
    %v569 = vmul.f32 %v546, 0.0625
    %v570 = vmul.f32 %v548, 0.0625
    %v571 = vmul.f32 %v550, 0.0625
    %v572 = vmul.f32 %v552, 0.0625
    %v573 = vmul.f32 %v554, 0.0625
    %v574 = vmul.f32 %v556, 0.0625
    %v575 = vmul.f32 %v558, 0.0625
    %v576 = vmul.f32 %v560, 0.0625
    %v577 = vmul.f32 %v561, %v561
    %v578 = vmul.f32 %v562, %v562
    %v579 = vmul.f32 %v563, %v563
    %v580 = vmul.f32 %v564, %v564
    %v581 = vmul.f32 %v565, %v565
    %v582 = vmul.f32 %v566, %v566
    %v583 = vmul.f32 %v567, %v567
    %v584 = vmul.f32 %v568, %v568
    %v585 = vsub.f32 %v569, %v577
    %v586 = vsub.f32 %v570, %v578
    %v587 = vsub.f32 %v571, %v579
    %v588 = vsub.f32 %v572, %v580
    %v589 = vsub.f32 %v573, %v581
    %v590 = vsub.f32 %v574, %v582
    %v591 = vsub.f32 %v575, %v583
    %v592 = vsub.f32 %v576, %v584
    %v593 = vmax.f32 %v585, 0.0
    %v594 = vmax.f32 %v586, 0.0
    %v595 = vmax.f32 %v587, 0.0
    %v596 = vmax.f32 %v588, 0.0
    %v597 = vmax.f32 %v589, 0.0
    %v598 = vmax.f32 %v590, 0.0
    %v599 = vmax.f32 %v591, 0.0
    %v600 = vmax.f32 %v592, 0.0
    %v601 = vsub.f32 %v511, %v561
    %v602 = vsub.f32 %v512, %v562
    %v603 = vsub.f32 %v513, %v563
    %v604 = vsub.f32 %v514, %v564
    %v605 = vsub.f32 %v515, %v565
    %v606 = vsub.f32 %v516, %v566
    %v607 = vsub.f32 %v517, %v567
    %v608 = vsub.f32 %v518, %v568
    %v609 = vadd.f32 %v593, 1e-05
    %v610 = vadd.f32 %v594, 1e-05
    %v611 = vadd.f32 %v595, 1e-05
    %v612 = vadd.f32 %v596, 1e-05
    %v613 = vadd.f32 %v597, 1e-05
    %v614 = vadd.f32 %v598, 1e-05
    %v615 = vadd.f32 %v599, 1e-05
    %v616 = vadd.f32 %v600, 1e-05
    %v617 = vrsqrt.pop %v609
    %v618 = vrsqrt.pop %v610
    %v619 = vrsqrt.pop %v611
    %v620 = vrsqrt.pop %v612
    %v621 = vrsqrt.pop %v613
    %v622 = vrsqrt.pop %v614
    %v623 = vrsqrt.pop %v615
    %v624 = vrsqrt.pop %v616
    %v625 = vmul.f32 %v601, %v617
    %v626 = vmul.f32 %v602, %v618
    %v627 = vmul.f32 %v603, %v619
    %v628 = vmul.f32 %v604, %v620
    %v629 = vmul.f32 %v605, %v621
    %v630 = vmul.f32 %v606, %v622
    %v631 = vmul.f32 %v607, %v623
    %v632 = vmul.f32 %v608, %v624
    %v633 = vlaneseq
    %v634 = vshrl.u32 %v633, 7
    %v635 = vsub.s32 0, %v634
    %v636 = vrot.slane %v519, %v635
    %v637 = vmul.f32 %v625, %v636
    %v638 = vmul.f32 %v626, %v636
    %v639 = vmul.f32 %v627, %v636
    %v640 = vmul.f32 %v628, %v636
    %v641 = vmul.f32 %v629, %v636
    %v642 = vmul.f32 %v630, %v636
    %v643 = vmul.f32 %v631, %v636
    %v644 = vmul.f32 %v632, %v636
    %v645 = vlaneseq
    %v646 = vshrl.u32 %v645, 7
    %v647 = vsub.s32 0, %v646
    %v648 = vrot.slane %v520, %v647
    %v649 = vadd.f32 %v637, %v648
    %v650 = vadd.f32 %v638, %v648
    %v651 = vadd.f32 %v639, %v648
    %v652 = vadd.f32 %v640, %v648
    %v653 = vadd.f32 %v641, %v648
    %v654 = vadd.f32 %v642, %v648
    %v655 = vadd.f32 %v643, %v648
    %v656 = vadd.f32 %v644, %v648
    %v657 = vpack.c.bf16 %v650, %v649
    %v658 = vpack.c.bf16 %v652, %v651
    %v659 = vpack.c.bf16 %v654, %v653
    %v660 = vpack.c.bf16 %v656, %v655
    %s661 = scalar_lea.vmem [#allocation2], 64
    %v662 = vld [vmem:[%s661] sm:$0xf]
    %v663 = vld [vmem:[%s661 + $0x4] sm:$0xf]
    %v664 = vld [vmem:[%s661 + $0x8] sm:$0xf]
    %v665 = vld [vmem:[%s661 + $0xc] sm:$0xf]
    %v666 = vld [vmem:[%s661 + $0x10] sm:$0xf]
    %v667 = vld [vmem:[%s661 + $0x14] sm:$0xf]
    %v668 = vld [vmem:[%s661 + $0x18] sm:$0xf]
    %v669 = vld [vmem:[%s661 + $0x1c] sm:$0xf]
    %v670 = vld [vmem:[%s661 + $0x20] sm:$0xf]
    %v671 = vld [vmem:[%s661 + $0x24] sm:$0xf]
    %v672 = vld [vmem:[%s661 + $0x28] sm:$0xf]
    %v673 = vld [vmem:[%s661 + $0x2c] sm:$0xf]
    %v674 = vld [vmem:[%s661 + $0x30] sm:$0xf]
    %v675 = vld [vmem:[%s661 + $0x34] sm:$0xf]
    %v676 = vld [vmem:[%s661 + $0x38] sm:$0xf]
    %v677 = vld [vmem:[%s661 + $0x3c] sm:$0xf]
    %v678 = vld [vmem:[%s4 + $0x1] sm:$0x1]
    %v679 = vlaneseq
    %v680 = vshrl.u32 %v679, 7
    %v681 = vsub.s32 0, %v680
    %v682 = vrot.slane %v678, %v681
    %v699 = vunpack.c.l.b16 %v662
    %v700 = vunpack.c.l.b16 %v663
    %v701 = vunpack.c.l.b16 %v664
    %v702 = vunpack.c.l.b16 %v665
    %v703 = vunpack.c.l.b16 %v666
    %v704 = vunpack.c.l.b16 %v667
    %v705 = vunpack.c.l.b16 %v668
    %v706 = vunpack.c.l.b16 %v669
    %v707 = vunpack.c.l.b16 %v670
    %v708 = vunpack.c.l.b16 %v671
    %v709 = vunpack.c.l.b16 %v672
    %v710 = vunpack.c.l.b16 %v673
    %v711 = vunpack.c.l.b16 %v674
    %v712 = vunpack.c.l.b16 %v675
    %v713 = vunpack.c.l.b16 %v676
    %v714 = vunpack.c.l.b16 %v677
    %v715 = vpack.c.b16 %v700, %v699
    %v716 = vpack.c.b16 %v702, %v701
    %v717 = vpack.c.b16 %v704, %v703
    %v718 = vpack.c.b16 %v706, %v705
    %v719 = vpack.c.b16 %v708, %v707
    %v720 = vpack.c.b16 %v710, %v709
    %v721 = vpack.c.b16 %v712, %v711
    %v722 = vpack.c.b16 %v714, %v713
    %731 = vmatprep.subr.bf16.mxu0 0
    %732 = vmatpush1.bf16.msra.mxu0 %v722
    %733 = vmatprep.subr.bf16.mxu0 0
    %734 = vmatpush1.bf16.msra.mxu0 %v721
    %735 = vmatprep.subr.bf16.mxu0 0
    %736 = vmatpush1.bf16.msra.mxu0 %v720
    %737 = vmatprep.subr.bf16.mxu0 0
    %738 = vmatpush1.bf16.msra.mxu0 %v719
    %739 = vmatprep.subr.bf16.mxu0 0
    %740 = vmatpush1.bf16.msra.mxu0 %v718
    %741 = vmatprep.subr.bf16.mxu0 0
    %742 = vmatpush1.bf16.msra.mxu0 %v717
    %743 = vmatprep.subr.bf16.mxu0 0
    %744 = vmatpush1.bf16.msra.mxu0 %v716
    %745 = vmatprep.subr.bf16.mxu0 0
    %746 = vmatpush1.bf16.msra.mxu0 %v715
    %747 = vmatprep.subr.bf16.mxu0 0
    %748 = vmatpush2.bf16.msra.mxu0 0
    %749 = vmatprep.subr.bf16.mxu0 0
    %750 = vmatpush2.bf16.msra.mxu0 0
    %751 = vmatprep.subr.bf16.mxu0 0
    %752 = vmatpush2.bf16.msra.mxu0 0
    %753 = vmatprep.subr.bf16.mxu0 0
    %754 = vmatpush2.bf16.msra.mxu0 0
    %755 = vmatprep.subr.bf16.mxu0 0
    %756 = vmatpush2.bf16.msra.mxu0 0
    %757 = vmatprep.subr.bf16.mxu0 0
    %758 = vmatpush2.bf16.msra.mxu0 0
    %759 = vmatprep.subr.bf16.mxu0 0
    %760 = vmatpush2.bf16.msra.mxu0 0
    %761 = vmatprep.subr.bf16.mxu0 0
    %762 = vmatpush2.bf16.msra.mxu0 0
    %763 = vmatprep.mubr.bf16.mxu0 0
    %764 = vmatmul.mubr.bf16.gmra.mxu0 %v657
    %v765 = vpop.f32.mrf.mxu0
    %v766 = vadd.f32 %v682, %v765
    %v767 = vpop.f32.mrf.mxu0
    %v768 = vpop.f32.mrf.mxu0
    %v769 = vadd.f32 %v682, %v768
    %v770 = vpop.f32.mrf.mxu0
    %771 = vmatprep.mubr.bf16.mxu0 0
    %772 = vmatmul.mubr.bf16.gmra.mxu0 %v658
    %v773 = vpop.f32.mrf.mxu0
    %v774 = vadd.f32 %v682, %v773
    %v775 = vpop.f32.mrf.mxu0
    %v776 = vpop.f32.mrf.mxu0
    %v777 = vadd.f32 %v682, %v776
    %v778 = vpop.f32.mrf.mxu0
    %779 = vmatprep.mubr.bf16.mxu0 0
    %780 = vmatmul.mubr.bf16.gmra.mxu0 %v659
    %v781 = vpop.f32.mrf.mxu0
    %v782 = vadd.f32 %v682, %v781
    %v783 = vpop.f32.mrf.mxu0
    %v784 = vpop.f32.mrf.mxu0
    %v785 = vadd.f32 %v682, %v784
    %v786 = vpop.f32.mrf.mxu0
    %787 = vmatprep.mubr.bf16.mxu0 0
    %788 = vmatmul.mubr.bf16.gmra.mxu0 %v660
    %v789 = vpop.f32.mrf.mxu0
    %v790 = vadd.f32 %v682, %v789
    %v791 = vpop.f32.mrf.mxu0
    %v792 = vpop.f32.mrf.mxu0
    %v793 = vadd.f32 %v682, %v792
    %v794 = vpop.f32.mrf.mxu0
    %795 = vdwg.mxu0
    %v796 = vmax.f32 %v766, 0.0
    %v797 = vmax.f32 %v769, 0.0
    %v798 = vmax.f32 %v774, 0.0
    %v799 = vmax.f32 %v777, 0.0
    %v800 = vmax.f32 %v782, 0.0
    %v801 = vmax.f32 %v785, 0.0
    %v802 = vmax.f32 %v790, 0.0
    %v803 = vmax.f32 %v793, 0.0
    %v804 = vpack.c.bf16 %v797, %v796
    %v805 = vpack.c.bf16 %v799, %v798
    %v806 = vpack.c.bf16 %v801, %v800
    %v807 = vpack.c.bf16 %v803, %v802
    %s808 = scalar_lea.vmem [#allocation5], 64
    %v809 = vld [vmem:[%s808] sm:$0xf]
    %v810 = vld [vmem:[%s808 + $0x4] sm:$0xf]
    %v811 = vld [vmem:[%s808 + $0x8] sm:$0xf]
    %v812 = vld [vmem:[%s808 + $0xc] sm:$0xf]
    %v813 = vld [vmem:[%s808 + $0x10] sm:$0xf]
    %v814 = vld [vmem:[%s808 + $0x14] sm:$0xf]
    %v815 = vld [vmem:[%s808 + $0x18] sm:$0xf]
    %v816 = vld [vmem:[%s808 + $0x1c] sm:$0xf]
    %v817 = vld [vmem:[%s808 + $0x20] sm:$0xf]
    %v818 = vld [vmem:[%s808 + $0x24] sm:$0xf]
    %v819 = vld [vmem:[%s808 + $0x28] sm:$0xf]
    %v820 = vld [vmem:[%s808 + $0x2c] sm:$0xf]
    %v821 = vld [vmem:[%s808 + $0x30] sm:$0xf]
    %v822 = vld [vmem:[%s808 + $0x34] sm:$0xf]
    %v823 = vld [vmem:[%s808 + $0x38] sm:$0xf]
    %v824 = vld [vmem:[%s808 + $0x3c] sm:$0xf]
    %v841 = vunpack.c.l.b16 %v809
    %v842 = vunpack.c.l.b16 %v810
    %v843 = vunpack.c.l.b16 %v811
    %v844 = vunpack.c.l.b16 %v812
    %v845 = vunpack.c.l.b16 %v813
    %v846 = vunpack.c.l.b16 %v814
    %v847 = vunpack.c.l.b16 %v815
    %v848 = vunpack.c.l.b16 %v816
    %v849 = vunpack.c.l.b16 %v817
    %v850 = vunpack.c.l.b16 %v818
    %v851 = vunpack.c.l.b16 %v819
    %v852 = vunpack.c.l.b16 %v820
    %v853 = vunpack.c.l.b16 %v821
    %v854 = vunpack.c.l.b16 %v822
    %v855 = vunpack.c.l.b16 %v823
    %v856 = vunpack.c.l.b16 %v824
    %v857 = vpack.c.b16 %v842, %v841
    %v858 = vpack.c.b16 %v844, %v843
    %v859 = vpack.c.b16 %v846, %v845
    %v860 = vpack.c.b16 %v848, %v847
    %v861 = vpack.c.b16 %v850, %v849
    %v862 = vpack.c.b16 %v852, %v851
    %v863 = vpack.c.b16 %v854, %v853
    %v864 = vpack.c.b16 %v856, %v855
    %873 = vmatprep.subr.bf16.mxu0 0
    %874 = vmatpush1.bf16.msra.mxu0 %v864
    %875 = vmatprep.subr.bf16.mxu0 0
    %876 = vmatpush1.bf16.msra.mxu0 %v863
    %877 = vmatprep.subr.bf16.mxu0 0
    %878 = vmatpush1.bf16.msra.mxu0 %v862
    %879 = vmatprep.subr.bf16.mxu0 0
    %880 = vmatpush1.bf16.msra.mxu0 %v861
    %881 = vmatprep.subr.bf16.mxu0 0
    %882 = vmatpush1.bf16.msra.mxu0 %v860
    %883 = vmatprep.subr.bf16.mxu0 0
    %884 = vmatpush1.bf16.msra.mxu0 %v859
    %885 = vmatprep.subr.bf16.mxu0 0
    %886 = vmatpush1.bf16.msra.mxu0 %v858
    %887 = vmatprep.subr.bf16.mxu0 0
    %888 = vmatpush1.bf16.msra.mxu0 %v857
    %889 = vmatprep.subr.bf16.mxu0 0
    %890 = vmatpush2.bf16.msra.mxu0 0
    %891 = vmatprep.subr.bf16.mxu0 0
    %892 = vmatpush2.bf16.msra.mxu0 0
    %893 = vmatprep.subr.bf16.mxu0 0
    %894 = vmatpush2.bf16.msra.mxu0 0
    %895 = vmatprep.subr.bf16.mxu0 0
    %896 = vmatpush2.bf16.msra.mxu0 0
    %897 = vmatprep.subr.bf16.mxu0 0
    %898 = vmatpush2.bf16.msra.mxu0 0
    %899 = vmatprep.subr.bf16.mxu0 0
    %900 = vmatpush2.bf16.msra.mxu0 0
    %901 = vmatprep.subr.bf16.mxu0 0
    %902 = vmatpush2.bf16.msra.mxu0 0
    %903 = vmatprep.subr.bf16.mxu0 0
    %904 = vmatpush2.bf16.msra.mxu0 0
    %905 = vmatprep.mubr.bf16.mxu0 0
    %906 = vmatmul.mubr.bf16.gmra.mxu0 %v804
    %v907 = vpop.f32.mrf.mxu0
    %v908 = vadd.f32 0.0, %v907
    %v909 = vpop.f32.mrf.mxu0
    %v910 = vpop.f32.mrf.mxu0
    %v911 = vadd.f32 0.0, %v910
    %v912 = vpop.f32.mrf.mxu0
    %913 = vmatprep.mubr.bf16.mxu0 0
    %914 = vmatmul.mubr.bf16.gmra.mxu0 %v805
    %v915 = vpop.f32.mrf.mxu0
    %v916 = vadd.f32 0.0, %v915
    %v917 = vpop.f32.mrf.mxu0
    %v918 = vpop.f32.mrf.mxu0
    %v919 = vadd.f32 0.0, %v918
    %v920 = vpop.f32.mrf.mxu0
    %921 = vmatprep.mubr.bf16.mxu0 0
    %922 = vmatmul.mubr.bf16.gmra.mxu0 %v806
    %v923 = vpop.f32.mrf.mxu0
    %v924 = vadd.f32 0.0, %v923
    %v925 = vpop.f32.mrf.mxu0
    %v926 = vpop.f32.mrf.mxu0
    %v927 = vadd.f32 0.0, %v926
    %v928 = vpop.f32.mrf.mxu0
    %929 = vmatprep.mubr.bf16.mxu0 0
    %930 = vmatmul.mubr.bf16.gmra.mxu0 %v807
    %v931 = vpop.f32.mrf.mxu0
    %v932 = vadd.f32 0.0, %v931
    %v933 = vpop.f32.mrf.mxu0
    %v934 = vpop.f32.mrf.mxu0
    %v935 = vadd.f32 0.0, %v934
    %v936 = vpop.f32.mrf.mxu0
    %937 = vdwg.mxu0
    %v938 = vadd.f32 %v511, %v908
    %v939 = vadd.f32 %v512, %v911
    %v940 = vadd.f32 %v513, %v916
    %v941 = vadd.f32 %v514, %v919
    %v942 = vadd.f32 %v515, %v924
    %v943 = vadd.f32 %v516, %v927
    %v944 = vadd.f32 %v517, %v932
    %v945 = vadd.f32 %v518, %v935
    %v946 = vld [vmem:[%s6 + $0x1] sm:$0x1]
    %v947 = vlaneseq
    %v948 = vshrl.u32 %v947, 7
    %v949 = vsub.s32 0, %v948
    %v950 = vrot.slane %v946, %v949
    %v951 = vadd.f32 %v938, %v950
    %v952 = vadd.f32 %v939, %v950
    %v953 = vadd.f32 %v940, %v950
    %v954 = vadd.f32 %v941, %v950
    %v955 = vadd.f32 %v942, %v950
    %v956 = vadd.f32 %v943, %v950
    %v957 = vadd.f32 %v944, %v950
    %v958 = vadd.f32 %v945, %v950
    %v959 = vld [vmem:[%s1 + $0x2] sm:$0x1]
    %v960 = vld [vmem:[%s2 + $0x2] sm:$0x1]
    %961 = vadd.xlane.f32.xlu0 %v951
    %v962 = vpop.xlane.xlu0 %961
    %963 = vadd.xlane.f32.xlu0 %v952
    %v964 = vpop.xlane.xlu0 %963
    %965 = vadd.xlane.f32.xlu0 %v953
    %v966 = vpop.xlane.xlu0 %965
    %967 = vadd.xlane.f32.xlu0 %v954
    %v968 = vpop.xlane.xlu0 %967
    %969 = vadd.xlane.f32.xlu0 %v955
    %v970 = vpop.xlane.xlu0 %969
    %971 = vadd.xlane.f32.xlu0 %v956
    %v972 = vpop.xlane.xlu0 %971
    %973 = vadd.xlane.f32.xlu0 %v957
    %v974 = vpop.xlane.xlu0 %973
    %975 = vadd.xlane.f32.xlu0 %v958
    %v976 = vpop.xlane.xlu0 %975
    %v977 = vmul.f32 %v951, %v951
    %v978 = vmul.f32 %v952, %v952
    %v979 = vmul.f32 %v953, %v953
    %v980 = vmul.f32 %v954, %v954
    %v981 = vmul.f32 %v955, %v955
    %v982 = vmul.f32 %v956, %v956
    %v983 = vmul.f32 %v957, %v957
    %v984 = vmul.f32 %v958, %v958
    %985 = vadd.xlane.f32.xlu0 %v977
    %v986 = vpop.xlane.xlu0 %985
    %987 = vadd.xlane.f32.xlu0 %v978
    %v988 = vpop.xlane.xlu0 %987
    %989 = vadd.xlane.f32.xlu0 %v979
    %v990 = vpop.xlane.xlu0 %989
    %991 = vadd.xlane.f32.xlu0 %v980
    %v992 = vpop.xlane.xlu0 %991
    %993 = vadd.xlane.f32.xlu0 %v981
    %v994 = vpop.xlane.xlu0 %993
    %995 = vadd.xlane.f32.xlu0 %v982
    %v996 = vpop.xlane.xlu0 %995
    %997 = vadd.xlane.f32.xlu0 %v983
    %v998 = vpop.xlane.xlu0 %997
    %999 = vadd.xlane.f32.xlu0 %v984
    %v1000 = vpop.xlane.xlu0 %999
    %v1001 = vmul.f32 %v962, 0.0625
    %v1002 = vmul.f32 %v964, 0.0625
    %v1003 = vmul.f32 %v966, 0.0625
    %v1004 = vmul.f32 %v968, 0.0625
    %v1005 = vmul.f32 %v970, 0.0625
    %v1006 = vmul.f32 %v972, 0.0625
    %v1007 = vmul.f32 %v974, 0.0625
    %v1008 = vmul.f32 %v976, 0.0625
    %v1009 = vmul.f32 %v986, 0.0625
    %v1010 = vmul.f32 %v988, 0.0625
    %v1011 = vmul.f32 %v990, 0.0625
    %v1012 = vmul.f32 %v992, 0.0625
    %v1013 = vmul.f32 %v994, 0.0625
    %v1014 = vmul.f32 %v996, 0.0625
    %v1015 = vmul.f32 %v998, 0.0625
    %v1016 = vmul.f32 %v1000, 0.0625
    %v1017 = vmul.f32 %v1001, %v1001
    %v1018 = vmul.f32 %v1002, %v1002
    %v1019 = vmul.f32 %v1003, %v1003
    %v1020 = vmul.f32 %v1004, %v1004
    %v1021 = vmul.f32 %v1005, %v1005
    %v1022 = vmul.f32 %v1006, %v1006
    %v1023 = vmul.f32 %v1007, %v1007
    %v1024 = vmul.f32 %v1008, %v1008
    %v1025 = vsub.f32 %v1009, %v1017
    %v1026 = vsub.f32 %v1010, %v1018
    %v1027 = vsub.f32 %v1011, %v1019
    %v1028 = vsub.f32 %v1012, %v1020
    %v1029 = vsub.f32 %v1013, %v1021
    %v1030 = vsub.f32 %v1014, %v1022
    %v1031 = vsub.f32 %v1015, %v1023
    %v1032 = vsub.f32 %v1016, %v1024
    %v1033 = vmax.f32 %v1025, 0.0
    %v1034 = vmax.f32 %v1026, 0.0
    %v1035 = vmax.f32 %v1027, 0.0
    %v1036 = vmax.f32 %v1028, 0.0
    %v1037 = vmax.f32 %v1029, 0.0
    %v1038 = vmax.f32 %v1030, 0.0
    %v1039 = vmax.f32 %v1031, 0.0
    %v1040 = vmax.f32 %v1032, 0.0
    %v1041 = vsub.f32 %v951, %v1001
    %v1042 = vsub.f32 %v952, %v1002
    %v1043 = vsub.f32 %v953, %v1003
    %v1044 = vsub.f32 %v954, %v1004
    %v1045 = vsub.f32 %v955, %v1005
    %v1046 = vsub.f32 %v956, %v1006
    %v1047 = vsub.f32 %v957, %v1007
    %v1048 = vsub.f32 %v958, %v1008
    %v1049 = vadd.f32 %v1033, 1e-05
    %v1050 = vadd.f32 %v1034, 1e-05
    %v1051 = vadd.f32 %v1035, 1e-05
    %v1052 = vadd.f32 %v1036, 1e-05
    %v1053 = vadd.f32 %v1037, 1e-05
    %v1054 = vadd.f32 %v1038, 1e-05
    %v1055 = vadd.f32 %v1039, 1e-05
    %v1056 = vadd.f32 %v1040, 1e-05
    %v1057 = vrsqrt.pop %v1049
    %v1058 = vrsqrt.pop %v1050
    %v1059 = vrsqrt.pop %v1051
    %v1060 = vrsqrt.pop %v1052
    %v1061 = vrsqrt.pop %v1053
    %v1062 = vrsqrt.pop %v1054
    %v1063 = vrsqrt.pop %v1055
    %v1064 = vrsqrt.pop %v1056
    %v1065 = vmul.f32 %v1041, %v1057
    %v1066 = vmul.f32 %v1042, %v1058
    %v1067 = vmul.f32 %v1043, %v1059
    %v1068 = vmul.f32 %v1044, %v1060
    %v1069 = vmul.f32 %v1045, %v1061
    %v1070 = vmul.f32 %v1046, %v1062
    %v1071 = vmul.f32 %v1047, %v1063
    %v1072 = vmul.f32 %v1048, %v1064
    %v1073 = vlaneseq
    %v1074 = vshrl.u32 %v1073, 7
    %v1075 = vsub.s32 0, %v1074
    %v1076 = vrot.slane %v959, %v1075
    %v1077 = vmul.f32 %v1065, %v1076
    %v1078 = vmul.f32 %v1066, %v1076
    %v1079 = vmul.f32 %v1067, %v1076
    %v1080 = vmul.f32 %v1068, %v1076
    %v1081 = vmul.f32 %v1069, %v1076
    %v1082 = vmul.f32 %v1070, %v1076
    %v1083 = vmul.f32 %v1071, %v1076
    %v1084 = vmul.f32 %v1072, %v1076
    %v1085 = vlaneseq
    %v1086 = vshrl.u32 %v1085, 7
    %v1087 = vsub.s32 0, %v1086
    %v1088 = vrot.slane %v960, %v1087
    %v1089 = vadd.f32 %v1077, %v1088
    %v1090 = vadd.f32 %v1078, %v1088
    %v1091 = vadd.f32 %v1079, %v1088
    %v1092 = vadd.f32 %v1080, %v1088
    %v1093 = vadd.f32 %v1081, %v1088
    %v1094 = vadd.f32 %v1082, %v1088
    %v1095 = vadd.f32 %v1083, %v1088
    %v1096 = vadd.f32 %v1084, %v1088
    %v1097 = vpack.c.bf16 %v1090, %v1089
    %v1098 = vpack.c.bf16 %v1092, %v1091
    %v1099 = vpack.c.bf16 %v1094, %v1093
    %v1100 = vpack.c.bf16 %v1096, %v1095
    %s1101 = scalar_lea.vmem [#allocation2], 128
    %v1102 = vld [vmem:[%s1101] sm:$0xf]
    %v1103 = vld [vmem:[%s1101 + $0x4] sm:$0xf]
    %v1104 = vld [vmem:[%s1101 + $0x8] sm:$0xf]
    %v1105 = vld [vmem:[%s1101 + $0xc] sm:$0xf]
    %v1106 = vld [vmem:[%s1101 + $0x10] sm:$0xf]
    %v1107 = vld [vmem:[%s1101 + $0x14] sm:$0xf]
    %v1108 = vld [vmem:[%s1101 + $0x18] sm:$0xf]
    %v1109 = vld [vmem:[%s1101 + $0x1c] sm:$0xf]
    %v1110 = vld [vmem:[%s1101 + $0x20] sm:$0xf]
    %v1111 = vld [vmem:[%s1101 + $0x24] sm:$0xf]
    %v1112 = vld [vmem:[%s1101 + $0x28] sm:$0xf]
    %v1113 = vld [vmem:[%s1101 + $0x2c] sm:$0xf]
    %v1114 = vld [vmem:[%s1101 + $0x30] sm:$0xf]
    %v1115 = vld [vmem:[%s1101 + $0x34] sm:$0xf]
    %v1116 = vld [vmem:[%s1101 + $0x38] sm:$0xf]
    %v1117 = vld [vmem:[%s1101 + $0x3c] sm:$0xf]
    %v1118 = vld [vmem:[%s4 + $0x2] sm:$0x1]
    %v1119 = vlaneseq
    %v1120 = vshrl.u32 %v1119, 7
    %v1121 = vsub.s32 0, %v1120
    %v1122 = vrot.slane %v1118, %v1121
    %v1139 = vunpack.c.l.b16 %v1102
    %v1140 = vunpack.c.l.b16 %v1103
    %v1141 = vunpack.c.l.b16 %v1104
    %v1142 = vunpack.c.l.b16 %v1105
    %v1143 = vunpack.c.l.b16 %v1106
    %v1144 = vunpack.c.l.b16 %v1107
    %v1145 = vunpack.c.l.b16 %v1108
    %v1146 = vunpack.c.l.b16 %v1109
    %v1147 = vunpack.c.l.b16 %v1110
    %v1148 = vunpack.c.l.b16 %v1111
    %v1149 = vunpack.c.l.b16 %v1112
    %v1150 = vunpack.c.l.b16 %v1113
    %v1151 = vunpack.c.l.b16 %v1114
    %v1152 = vunpack.c.l.b16 %v1115
    %v1153 = vunpack.c.l.b16 %v1116
    %v1154 = vunpack.c.l.b16 %v1117
    %v1155 = vpack.c.b16 %v1140, %v1139
    %v1156 = vpack.c.b16 %v1142, %v1141
    %v1157 = vpack.c.b16 %v1144, %v1143
    %v1158 = vpack.c.b16 %v1146, %v1145
    %v1159 = vpack.c.b16 %v1148, %v1147
    %v1160 = vpack.c.b16 %v1150, %v1149
    %v1161 = vpack.c.b16 %v1152, %v1151
    %v1162 = vpack.c.b16 %v1154, %v1153
    %1171 = vmatprep.subr.bf16.mxu0 0
    %1172 = vmatpush1.bf16.msra.mxu0 %v1162
    %1173 = vmatprep.subr.bf16.mxu0 0
    %1174 = vmatpush1.bf16.msra.mxu0 %v1161
    %1175 = vmatprep.subr.bf16.mxu0 0
    %1176 = vmatpush1.bf16.msra.mxu0 %v1160
    %1177 = vmatprep.subr.bf16.mxu0 0
    %1178 = vmatpush1.bf16.msra.mxu0 %v1159
    %1179 = vmatprep.subr.bf16.mxu0 0
    %1180 = vmatpush1.bf16.msra.mxu0 %v1158
    %1181 = vmatprep.subr.bf16.mxu0 0
    %1182 = vmatpush1.bf16.msra.mxu0 %v1157
    %1183 = vmatprep.subr.bf16.mxu0 0
    %1184 = vmatpush1.bf16.msra.mxu0 %v1156
    %1185 = vmatprep.subr.bf16.mxu0 0
    %1186 = vmatpush1.bf16.msra.mxu0 %v1155
    %1187 = vmatprep.subr.bf16.mxu0 0
    %1188 = vmatpush2.bf16.msra.mxu0 0
    %1189 = vmatprep.subr.bf16.mxu0 0
    %1190 = vmatpush2.bf16.msra.mxu0 0
    %1191 = vmatprep.subr.bf16.mxu0 0
    %1192 = vmatpush2.bf16.msra.mxu0 0
    %1193 = vmatprep.subr.bf16.mxu0 0
    %1194 = vmatpush2.bf16.msra.mxu0 0
    %1195 = vmatprep.subr.bf16.mxu0 0
    %1196 = vmatpush2.bf16.msra.mxu0 0
    %1197 = vmatprep.subr.bf16.mxu0 0
    %1198 = vmatpush2.bf16.msra.mxu0 0
    %1199 = vmatprep.subr.bf16.mxu0 0
    %1200 = vmatpush2.bf16.msra.mxu0 0
    %1201 = vmatprep.subr.bf16.mxu0 0
    %1202 = vmatpush2.bf16.msra.mxu0 0
    %1203 = vmatprep.mubr.bf16.mxu0 0
    %1204 = vmatmul.mubr.bf16.gmra.mxu0 %v1097
    %v1205 = vpop.f32.mrf.mxu0
    %v1206 = vadd.f32 %v1122, %v1205
    %v1207 = vpop.f32.mrf.mxu0
    %v1208 = vpop.f32.mrf.mxu0
    %v1209 = vadd.f32 %v1122, %v1208
    %v1210 = vpop.f32.mrf.mxu0
    %1211 = vmatprep.mubr.bf16.mxu0 0
    %1212 = vmatmul.mubr.bf16.gmra.mxu0 %v1098
    %v1213 = vpop.f32.mrf.mxu0
    %v1214 = vadd.f32 %v1122, %v1213
    %v1215 = vpop.f32.mrf.mxu0
    %v1216 = vpop.f32.mrf.mxu0
    %v1217 = vadd.f32 %v1122, %v1216
    %v1218 = vpop.f32.mrf.mxu0
    %1219 = vmatprep.mubr.bf16.mxu0 0
    %1220 = vmatmul.mubr.bf16.gmra.mxu0 %v1099
    %v1221 = vpop.f32.mrf.mxu0
    %v1222 = vadd.f32 %v1122, %v1221
    %v1223 = vpop.f32.mrf.mxu0
    %v1224 = vpop.f32.mrf.mxu0
    %v1225 = vadd.f32 %v1122, %v1224
    %v1226 = vpop.f32.mrf.mxu0
    %1227 = vmatprep.mubr.bf16.mxu0 0
    %1228 = vmatmul.mubr.bf16.gmra.mxu0 %v1100
    %v1229 = vpop.f32.mrf.mxu0
    %v1230 = vadd.f32 %v1122, %v1229
    %v1231 = vpop.f32.mrf.mxu0
    %v1232 = vpop.f32.mrf.mxu0
    %v1233 = vadd.f32 %v1122, %v1232
    %v1234 = vpop.f32.mrf.mxu0
    %1235 = vdwg.mxu0
    %v1236 = vmax.f32 %v1206, 0.0
    %v1237 = vmax.f32 %v1209, 0.0
    %v1238 = vmax.f32 %v1214, 0.0
    %v1239 = vmax.f32 %v1217, 0.0
    %v1240 = vmax.f32 %v1222, 0.0
    %v1241 = vmax.f32 %v1225, 0.0
    %v1242 = vmax.f32 %v1230, 0.0
    %v1243 = vmax.f32 %v1233, 0.0
    %v1244 = vpack.c.bf16 %v1237, %v1236
    %v1245 = vpack.c.bf16 %v1239, %v1238
    %v1246 = vpack.c.bf16 %v1241, %v1240
    %v1247 = vpack.c.bf16 %v1243, %v1242
    %s1248 = scalar_lea.vmem [#allocation5], 128
    %v1249 = vld [vmem:[%s1248] sm:$0xf]
    %v1250 = vld [vmem:[%s1248 + $0x4] sm:$0xf]
    %v1251 = vld [vmem:[%s1248 + $0x8] sm:$0xf]
    %v1252 = vld [vmem:[%s1248 + $0xc] sm:$0xf]
    %v1253 = vld [vmem:[%s1248 + $0x10] sm:$0xf]
    %v1254 = vld [vmem:[%s1248 + $0x14] sm:$0xf]
    %v1255 = vld [vmem:[%s1248 + $0x18] sm:$0xf]
    %v1256 = vld [vmem:[%s1248 + $0x1c] sm:$0xf]
    %v1257 = vld [vmem:[%s1248 + $0x20] sm:$0xf]
    %v1258 = vld [vmem:[%s1248 + $0x24] sm:$0xf]
    %v1259 = vld [vmem:[%s1248 + $0x28] sm:$0xf]
    %v1260 = vld [vmem:[%s1248 + $0x2c] sm:$0xf]
    %v1261 = vld [vmem:[%s1248 + $0x30] sm:$0xf]
    %v1262 = vld [vmem:[%s1248 + $0x34] sm:$0xf]
    %v1263 = vld [vmem:[%s1248 + $0x38] sm:$0xf]
    %v1264 = vld [vmem:[%s1248 + $0x3c] sm:$0xf]
    %v1281 = vunpack.c.l.b16 %v1249
    %v1282 = vunpack.c.l.b16 %v1250
    %v1283 = vunpack.c.l.b16 %v1251
    %v1284 = vunpack.c.l.b16 %v1252
    %v1285 = vunpack.c.l.b16 %v1253
    %v1286 = vunpack.c.l.b16 %v1254
    %v1287 = vunpack.c.l.b16 %v1255
    %v1288 = vunpack.c.l.b16 %v1256
    %v1289 = vunpack.c.l.b16 %v1257
    %v1290 = vunpack.c.l.b16 %v1258
    %v1291 = vunpack.c.l.b16 %v1259
    %v1292 = vunpack.c.l.b16 %v1260
    %v1293 = vunpack.c.l.b16 %v1261
    %v1294 = vunpack.c.l.b16 %v1262
    %v1295 = vunpack.c.l.b16 %v1263
    %v1296 = vunpack.c.l.b16 %v1264
    %v1297 = vpack.c.b16 %v1282, %v1281
    %v1298 = vpack.c.b16 %v1284, %v1283
    %v1299 = vpack.c.b16 %v1286, %v1285
    %v1300 = vpack.c.b16 %v1288, %v1287
    %v1301 = vpack.c.b16 %v1290, %v1289
    %v1302 = vpack.c.b16 %v1292, %v1291
    %v1303 = vpack.c.b16 %v1294, %v1293
    %v1304 = vpack.c.b16 %v1296, %v1295
    %1313 = vmatprep.subr.bf16.mxu0 0
    %1314 = vmatpush1.bf16.msra.mxu0 %v1304
    %1315 = vmatprep.subr.bf16.mxu0 0
    %1316 = vmatpush1.bf16.msra.mxu0 %v1303
    %1317 = vmatprep.subr.bf16.mxu0 0
    %1318 = vmatpush1.bf16.msra.mxu0 %v1302
    %1319 = vmatprep.subr.bf16.mxu0 0
    %1320 = vmatpush1.bf16.msra.mxu0 %v1301
    %1321 = vmatprep.subr.bf16.mxu0 0
    %1322 = vmatpush1.bf16.msra.mxu0 %v1300
    %1323 = vmatprep.subr.bf16.mxu0 0
    %1324 = vmatpush1.bf16.msra.mxu0 %v1299
    %1325 = vmatprep.subr.bf16.mxu0 0
    %1326 = vmatpush1.bf16.msra.mxu0 %v1298
    %1327 = vmatprep.subr.bf16.mxu0 0
    %1328 = vmatpush1.bf16.msra.mxu0 %v1297
    %1329 = vmatprep.subr.bf16.mxu0 0
    %1330 = vmatpush2.bf16.msra.mxu0 0
    %1331 = vmatprep.subr.bf16.mxu0 0
    %1332 = vmatpush2.bf16.msra.mxu0 0
    %1333 = vmatprep.subr.bf16.mxu0 0
    %1334 = vmatpush2.bf16.msra.mxu0 0
    %1335 = vmatprep.subr.bf16.mxu0 0
    %1336 = vmatpush2.bf16.msra.mxu0 0
    %1337 = vmatprep.subr.bf16.mxu0 0
    %1338 = vmatpush2.bf16.msra.mxu0 0
    %1339 = vmatprep.subr.bf16.mxu0 0
    %1340 = vmatpush2.bf16.msra.mxu0 0
    %1341 = vmatprep.subr.bf16.mxu0 0
    %1342 = vmatpush2.bf16.msra.mxu0 0
    %1343 = vmatprep.subr.bf16.mxu0 0
    %1344 = vmatpush2.bf16.msra.mxu0 0
    %1345 = vmatprep.mubr.bf16.mxu0 0
    %1346 = vmatmul.mubr.bf16.gmra.mxu0 %v1244
    %v1347 = vpop.f32.mrf.mxu0
    %v1348 = vadd.f32 0.0, %v1347
    %v1349 = vpop.f32.mrf.mxu0
    %v1350 = vpop.f32.mrf.mxu0
    %v1351 = vadd.f32 0.0, %v1350
    %v1352 = vpop.f32.mrf.mxu0
    %1353 = vmatprep.mubr.bf16.mxu0 0
    %1354 = vmatmul.mubr.bf16.gmra.mxu0 %v1245
    %v1355 = vpop.f32.mrf.mxu0
    %v1356 = vadd.f32 0.0, %v1355
    %v1357 = vpop.f32.mrf.mxu0
    %v1358 = vpop.f32.mrf.mxu0
    %v1359 = vadd.f32 0.0, %v1358
    %v1360 = vpop.f32.mrf.mxu0
    %1361 = vmatprep.mubr.bf16.mxu0 0
    %1362 = vmatmul.mubr.bf16.gmra.mxu0 %v1246
    %v1363 = vpop.f32.mrf.mxu0
    %v1364 = vadd.f32 0.0, %v1363
    %v1365 = vpop.f32.mrf.mxu0
    %v1366 = vpop.f32.mrf.mxu0
    %v1367 = vadd.f32 0.0, %v1366
    %v1368 = vpop.f32.mrf.mxu0
    %1369 = vmatprep.mubr.bf16.mxu0 0
    %1370 = vmatmul.mubr.bf16.gmra.mxu0 %v1247
    %v1371 = vpop.f32.mrf.mxu0
    %v1372 = vadd.f32 0.0, %v1371
    %v1373 = vpop.f32.mrf.mxu0
    %v1374 = vpop.f32.mrf.mxu0
    %v1375 = vadd.f32 0.0, %v1374
    %v1376 = vpop.f32.mrf.mxu0
    %1377 = vdwg.mxu0
    %v1378 = vadd.f32 %v951, %v1348
    %v1379 = vadd.f32 %v952, %v1351
    %v1380 = vadd.f32 %v953, %v1356
    %v1381 = vadd.f32 %v954, %v1359
    %v1382 = vadd.f32 %v955, %v1364
    %v1383 = vadd.f32 %v956, %v1367
    %v1384 = vadd.f32 %v957, %v1372
    %v1385 = vadd.f32 %v958, %v1375
    %v1386 = vld [vmem:[%s6 + $0x2] sm:$0x1]
    %v1387 = vlaneseq
    %v1388 = vshrl.u32 %v1387, 7
    %v1389 = vsub.s32 0, %v1388
    %v1390 = vrot.slane %v1386, %v1389
    %v1391 = vadd.f32 %v1378, %v1390
    %v1392 = vadd.f32 %v1379, %v1390
    %v1393 = vadd.f32 %v1380, %v1390
    %v1394 = vadd.f32 %v1381, %v1390
    %v1395 = vadd.f32 %v1382, %v1390
    %v1396 = vadd.f32 %v1383, %v1390
    %v1397 = vadd.f32 %v1384, %v1390
    %v1398 = vadd.f32 %v1385, %v1390
    %v1399 = vld [vmem:[%s1 + $0x3] sm:$0x1]
    %v1400 = vld [vmem:[%s2 + $0x3] sm:$0x1]
    %1401 = vadd.xlane.f32.xlu0 %v1391
    %v1402 = vpop.xlane.xlu0 %1401
    %1403 = vadd.xlane.f32.xlu0 %v1392
    %v1404 = vpop.xlane.xlu0 %1403
    %1405 = vadd.xlane.f32.xlu0 %v1393
    %v1406 = vpop.xlane.xlu0 %1405
    %1407 = vadd.xlane.f32.xlu0 %v1394
    %v1408 = vpop.xlane.xlu0 %1407
    %1409 = vadd.xlane.f32.xlu0 %v1395
    %v1410 = vpop.xlane.xlu0 %1409
    %1411 = vadd.xlane.f32.xlu0 %v1396
    %v1412 = vpop.xlane.xlu0 %1411
    %1413 = vadd.xlane.f32.xlu0 %v1397
    %v1414 = vpop.xlane.xlu0 %1413
    %1415 = vadd.xlane.f32.xlu0 %v1398
    %v1416 = vpop.xlane.xlu0 %1415
    %v1417 = vmul.f32 %v1391, %v1391
    %v1418 = vmul.f32 %v1392, %v1392
    %v1419 = vmul.f32 %v1393, %v1393
    %v1420 = vmul.f32 %v1394, %v1394
    %v1421 = vmul.f32 %v1395, %v1395
    %v1422 = vmul.f32 %v1396, %v1396
    %v1423 = vmul.f32 %v1397, %v1397
    %v1424 = vmul.f32 %v1398, %v1398
    %1425 = vadd.xlane.f32.xlu0 %v1417
    %v1426 = vpop.xlane.xlu0 %1425
    %1427 = vadd.xlane.f32.xlu0 %v1418
    %v1428 = vpop.xlane.xlu0 %1427
    %1429 = vadd.xlane.f32.xlu0 %v1419
    %v1430 = vpop.xlane.xlu0 %1429
    %1431 = vadd.xlane.f32.xlu0 %v1420
    %v1432 = vpop.xlane.xlu0 %1431
    %1433 = vadd.xlane.f32.xlu0 %v1421
    %v1434 = vpop.xlane.xlu0 %1433
    %1435 = vadd.xlane.f32.xlu0 %v1422
    %v1436 = vpop.xlane.xlu0 %1435
    %1437 = vadd.xlane.f32.xlu0 %v1423
    %v1438 = vpop.xlane.xlu0 %1437
    %1439 = vadd.xlane.f32.xlu0 %v1424
    %v1440 = vpop.xlane.xlu0 %1439
    %v1441 = vmul.f32 %v1402, 0.0625
    %v1442 = vmul.f32 %v1404, 0.0625
    %v1443 = vmul.f32 %v1406, 0.0625
    %v1444 = vmul.f32 %v1408, 0.0625
    %v1445 = vmul.f32 %v1410, 0.0625
    %v1446 = vmul.f32 %v1412, 0.0625
    %v1447 = vmul.f32 %v1414, 0.0625
    %v1448 = vmul.f32 %v1416, 0.0625
    %v1449 = vmul.f32 %v1426, 0.0625
    %v1450 = vmul.f32 %v1428, 0.0625
    %v1451 = vmul.f32 %v1430, 0.0625
    %v1452 = vmul.f32 %v1432, 0.0625
    %v1453 = vmul.f32 %v1434, 0.0625
    %v1454 = vmul.f32 %v1436, 0.0625
    %v1455 = vmul.f32 %v1438, 0.0625
    %v1456 = vmul.f32 %v1440, 0.0625
    %v1457 = vmul.f32 %v1441, %v1441
    %v1458 = vmul.f32 %v1442, %v1442
    %v1459 = vmul.f32 %v1443, %v1443
    %v1460 = vmul.f32 %v1444, %v1444
    %v1461 = vmul.f32 %v1445, %v1445
    %v1462 = vmul.f32 %v1446, %v1446
    %v1463 = vmul.f32 %v1447, %v1447
    %v1464 = vmul.f32 %v1448, %v1448
    %v1465 = vsub.f32 %v1449, %v1457
    %v1466 = vsub.f32 %v1450, %v1458
    %v1467 = vsub.f32 %v1451, %v1459
    %v1468 = vsub.f32 %v1452, %v1460
    %v1469 = vsub.f32 %v1453, %v1461
    %v1470 = vsub.f32 %v1454, %v1462
    %v1471 = vsub.f32 %v1455, %v1463
    %v1472 = vsub.f32 %v1456, %v1464
    %v1473 = vmax.f32 %v1465, 0.0
    %v1474 = vmax.f32 %v1466, 0.0
    %v1475 = vmax.f32 %v1467, 0.0
    %v1476 = vmax.f32 %v1468, 0.0
    %v1477 = vmax.f32 %v1469, 0.0
    %v1478 = vmax.f32 %v1470, 0.0
    %v1479 = vmax.f32 %v1471, 0.0
    %v1480 = vmax.f32 %v1472, 0.0
    %v1481 = vsub.f32 %v1391, %v1441
    %v1482 = vsub.f32 %v1392, %v1442
    %v1483 = vsub.f32 %v1393, %v1443
    %v1484 = vsub.f32 %v1394, %v1444
    %v1485 = vsub.f32 %v1395, %v1445
    %v1486 = vsub.f32 %v1396, %v1446
    %v1487 = vsub.f32 %v1397, %v1447
    %v1488 = vsub.f32 %v1398, %v1448
    %v1489 = vadd.f32 %v1473, 1e-05
    %v1490 = vadd.f32 %v1474, 1e-05
    %v1491 = vadd.f32 %v1475, 1e-05
    %v1492 = vadd.f32 %v1476, 1e-05
    %v1493 = vadd.f32 %v1477, 1e-05
    %v1494 = vadd.f32 %v1478, 1e-05
    %v1495 = vadd.f32 %v1479, 1e-05
    %v1496 = vadd.f32 %v1480, 1e-05
    %v1497 = vrsqrt.pop %v1489
    %v1498 = vrsqrt.pop %v1490
    %v1499 = vrsqrt.pop %v1491
    %v1500 = vrsqrt.pop %v1492
    %v1501 = vrsqrt.pop %v1493
    %v1502 = vrsqrt.pop %v1494
    %v1503 = vrsqrt.pop %v1495
    %v1504 = vrsqrt.pop %v1496
    %v1505 = vmul.f32 %v1481, %v1497
    %v1506 = vmul.f32 %v1482, %v1498
    %v1507 = vmul.f32 %v1483, %v1499
    %v1508 = vmul.f32 %v1484, %v1500
    %v1509 = vmul.f32 %v1485, %v1501
    %v1510 = vmul.f32 %v1486, %v1502
    %v1511 = vmul.f32 %v1487, %v1503
    %v1512 = vmul.f32 %v1488, %v1504
    %v1513 = vlaneseq
    %v1514 = vshrl.u32 %v1513, 7
    %v1515 = vsub.s32 0, %v1514
    %v1516 = vrot.slane %v1399, %v1515
    %v1517 = vmul.f32 %v1505, %v1516
    %v1518 = vmul.f32 %v1506, %v1516
    %v1519 = vmul.f32 %v1507, %v1516
    %v1520 = vmul.f32 %v1508, %v1516
    %v1521 = vmul.f32 %v1509, %v1516
    %v1522 = vmul.f32 %v1510, %v1516
    %v1523 = vmul.f32 %v1511, %v1516
    %v1524 = vmul.f32 %v1512, %v1516
    %v1525 = vlaneseq
    %v1526 = vshrl.u32 %v1525, 7
    %v1527 = vsub.s32 0, %v1526
    %v1528 = vrot.slane %v1400, %v1527
    %v1529 = vadd.f32 %v1517, %v1528
    %v1530 = vadd.f32 %v1518, %v1528
    %v1531 = vadd.f32 %v1519, %v1528
    %v1532 = vadd.f32 %v1520, %v1528
    %v1533 = vadd.f32 %v1521, %v1528
    %v1534 = vadd.f32 %v1522, %v1528
    %v1535 = vadd.f32 %v1523, %v1528
    %v1536 = vadd.f32 %v1524, %v1528
    %v1537 = vpack.c.bf16 %v1530, %v1529
    %v1538 = vpack.c.bf16 %v1532, %v1531
    %v1539 = vpack.c.bf16 %v1534, %v1533
    %v1540 = vpack.c.bf16 %v1536, %v1535
    %s1541 = scalar_lea.vmem [#allocation2], 192
    %v1542 = vld [vmem:[%s1541] sm:$0xf]
    %v1543 = vld [vmem:[%s1541 + $0x4] sm:$0xf]
    %v1544 = vld [vmem:[%s1541 + $0x8] sm:$0xf]
    %v1545 = vld [vmem:[%s1541 + $0xc] sm:$0xf]
    %v1546 = vld [vmem:[%s1541 + $0x10] sm:$0xf]
    %v1547 = vld [vmem:[%s1541 + $0x14] sm:$0xf]
    %v1548 = vld [vmem:[%s1541 + $0x18] sm:$0xf]
    %v1549 = vld [vmem:[%s1541 + $0x1c] sm:$0xf]
    %v1550 = vld [vmem:[%s1541 + $0x20] sm:$0xf]
    %v1551 = vld [vmem:[%s1541 + $0x24] sm:$0xf]
    %v1552 = vld [vmem:[%s1541 + $0x28] sm:$0xf]
    %v1553 = vld [vmem:[%s1541 + $0x2c] sm:$0xf]
    %v1554 = vld [vmem:[%s1541 + $0x30] sm:$0xf]
    %v1555 = vld [vmem:[%s1541 + $0x34] sm:$0xf]
    %v1556 = vld [vmem:[%s1541 + $0x38] sm:$0xf]
    %v1557 = vld [vmem:[%s1541 + $0x3c] sm:$0xf]
    %v1558 = vld [vmem:[%s4 + $0x3] sm:$0x1]
    %v1559 = vlaneseq
    %v1560 = vshrl.u32 %v1559, 7
    %v1561 = vsub.s32 0, %v1560
    %v1562 = vrot.slane %v1558, %v1561
    %v1579 = vunpack.c.l.b16 %v1542
    %v1580 = vunpack.c.l.b16 %v1543
    %v1581 = vunpack.c.l.b16 %v1544
    %v1582 = vunpack.c.l.b16 %v1545
    %v1583 = vunpack.c.l.b16 %v1546
    %v1584 = vunpack.c.l.b16 %v1547
    %v1585 = vunpack.c.l.b16 %v1548
    %v1586 = vunpack.c.l.b16 %v1549
    %v1587 = vunpack.c.l.b16 %v1550
    %v1588 = vunpack.c.l.b16 %v1551
    %v1589 = vunpack.c.l.b16 %v1552
    %v1590 = vunpack.c.l.b16 %v1553
    %v1591 = vunpack.c.l.b16 %v1554
    %v1592 = vunpack.c.l.b16 %v1555
    %v1593 = vunpack.c.l.b16 %v1556
    %v1594 = vunpack.c.l.b16 %v1557
    %v1595 = vpack.c.b16 %v1580, %v1579
    %v1596 = vpack.c.b16 %v1582, %v1581
    %v1597 = vpack.c.b16 %v1584, %v1583
    %v1598 = vpack.c.b16 %v1586, %v1585
    %v1599 = vpack.c.b16 %v1588, %v1587
    %v1600 = vpack.c.b16 %v1590, %v1589
    %v1601 = vpack.c.b16 %v1592, %v1591
    %v1602 = vpack.c.b16 %v1594, %v1593
    %1611 = vmatprep.subr.bf16.mxu0 0
    %1612 = vmatpush1.bf16.msra.mxu0 %v1602
    %1613 = vmatprep.subr.bf16.mxu0 0
    %1614 = vmatpush1.bf16.msra.mxu0 %v1601
    %1615 = vmatprep.subr.bf16.mxu0 0
    %1616 = vmatpush1.bf16.msra.mxu0 %v1600
    %1617 = vmatprep.subr.bf16.mxu0 0
    %1618 = vmatpush1.bf16.msra.mxu0 %v1599
    %1619 = vmatprep.subr.bf16.mxu0 0
    %1620 = vmatpush1.bf16.msra.mxu0 %v1598
    %1621 = vmatprep.subr.bf16.mxu0 0
    %1622 = vmatpush1.bf16.msra.mxu0 %v1597
    %1623 = vmatprep.subr.bf16.mxu0 0
    %1624 = vmatpush1.bf16.msra.mxu0 %v1596
    %1625 = vmatprep.subr.bf16.mxu0 0
    %1626 = vmatpush1.bf16.msra.mxu0 %v1595
    %1627 = vmatprep.subr.bf16.mxu0 0
    %1628 = vmatpush2.bf16.msra.mxu0 0
    %1629 = vmatprep.subr.bf16.mxu0 0
    %1630 = vmatpush2.bf16.msra.mxu0 0
    %1631 = vmatprep.subr.bf16.mxu0 0
    %1632 = vmatpush2.bf16.msra.mxu0 0
    %1633 = vmatprep.subr.bf16.mxu0 0
    %1634 = vmatpush2.bf16.msra.mxu0 0
    %1635 = vmatprep.subr.bf16.mxu0 0
    %1636 = vmatpush2.bf16.msra.mxu0 0
    %1637 = vmatprep.subr.bf16.mxu0 0
    %1638 = vmatpush2.bf16.msra.mxu0 0
    %1639 = vmatprep.subr.bf16.mxu0 0
    %1640 = vmatpush2.bf16.msra.mxu0 0
    %1641 = vmatprep.subr.bf16.mxu0 0
    %1642 = vmatpush2.bf16.msra.mxu0 0
    %1643 = vmatprep.mubr.bf16.mxu0 0
    %1644 = vmatmul.mubr.bf16.gmra.mxu0 %v1537
    %v1645 = vpop.f32.mrf.mxu0
    %v1646 = vadd.f32 %v1562, %v1645
    %v1647 = vpop.f32.mrf.mxu0
    %v1648 = vpop.f32.mrf.mxu0
    %v1649 = vadd.f32 %v1562, %v1648
    %v1650 = vpop.f32.mrf.mxu0
    %1651 = vmatprep.mubr.bf16.mxu0 0
    %1652 = vmatmul.mubr.bf16.gmra.mxu0 %v1538
    %v1653 = vpop.f32.mrf.mxu0
    %v1654 = vadd.f32 %v1562, %v1653
    %v1655 = vpop.f32.mrf.mxu0
    %v1656 = vpop.f32.mrf.mxu0
    %v1657 = vadd.f32 %v1562, %v1656
    %v1658 = vpop.f32.mrf.mxu0
    %1659 = vmatprep.mubr.bf16.mxu0 0
    %1660 = vmatmul.mubr.bf16.gmra.mxu0 %v1539
    %v1661 = vpop.f32.mrf.mxu0
    %v1662 = vadd.f32 %v1562, %v1661
    %v1663 = vpop.f32.mrf.mxu0
    %v1664 = vpop.f32.mrf.mxu0
    %v1665 = vadd.f32 %v1562, %v1664
    %v1666 = vpop.f32.mrf.mxu0
    %1667 = vmatprep.mubr.bf16.mxu0 0
    %1668 = vmatmul.mubr.bf16.gmra.mxu0 %v1540
    %v1669 = vpop.f32.mrf.mxu0
    %v1670 = vadd.f32 %v1562, %v1669
    %v1671 = vpop.f32.mrf.mxu0
    %v1672 = vpop.f32.mrf.mxu0
    %v1673 = vadd.f32 %v1562, %v1672
    %v1674 = vpop.f32.mrf.mxu0
    %1675 = vdwg.mxu0
    %v1676 = vmax.f32 %v1646, 0.0
    %v1677 = vmax.f32 %v1649, 0.0
    %v1678 = vmax.f32 %v1654, 0.0
    %v1679 = vmax.f32 %v1657, 0.0
    %v1680 = vmax.f32 %v1662, 0.0
    %v1681 = vmax.f32 %v1665, 0.0
    %v1682 = vmax.f32 %v1670, 0.0
    %v1683 = vmax.f32 %v1673, 0.0
    %v1684 = vpack.c.bf16 %v1677, %v1676
    %v1685 = vpack.c.bf16 %v1679, %v1678
    %v1686 = vpack.c.bf16 %v1681, %v1680
    %v1687 = vpack.c.bf16 %v1683, %v1682
    %s1688 = scalar_lea.vmem [#allocation5], 192
    %v1689 = vld [vmem:[%s1688] sm:$0xf]
    %v1690 = vld [vmem:[%s1688 + $0x4] sm:$0xf]
    %v1691 = vld [vmem:[%s1688 + $0x8] sm:$0xf]
    %v1692 = vld [vmem:[%s1688 + $0xc] sm:$0xf]
    %v1693 = vld [vmem:[%s1688 + $0x10] sm:$0xf]
    %v1694 = vld [vmem:[%s1688 + $0x14] sm:$0xf]
    %v1695 = vld [vmem:[%s1688 + $0x18] sm:$0xf]
    %v1696 = vld [vmem:[%s1688 + $0x1c] sm:$0xf]
    %v1697 = vld [vmem:[%s1688 + $0x20] sm:$0xf]
    %v1698 = vld [vmem:[%s1688 + $0x24] sm:$0xf]
    %v1699 = vld [vmem:[%s1688 + $0x28] sm:$0xf]
    %v1700 = vld [vmem:[%s1688 + $0x2c] sm:$0xf]
    %v1701 = vld [vmem:[%s1688 + $0x30] sm:$0xf]
    %v1702 = vld [vmem:[%s1688 + $0x34] sm:$0xf]
    %v1703 = vld [vmem:[%s1688 + $0x38] sm:$0xf]
    %v1704 = vld [vmem:[%s1688 + $0x3c] sm:$0xf]
    %v1721 = vunpack.c.l.b16 %v1689
    %v1722 = vunpack.c.l.b16 %v1690
    %v1723 = vunpack.c.l.b16 %v1691
    %v1724 = vunpack.c.l.b16 %v1692
    %v1725 = vunpack.c.l.b16 %v1693
    %v1726 = vunpack.c.l.b16 %v1694
    %v1727 = vunpack.c.l.b16 %v1695
    %v1728 = vunpack.c.l.b16 %v1696
    %v1729 = vunpack.c.l.b16 %v1697
    %v1730 = vunpack.c.l.b16 %v1698
    %v1731 = vunpack.c.l.b16 %v1699
    %v1732 = vunpack.c.l.b16 %v1700
    %v1733 = vunpack.c.l.b16 %v1701
    %v1734 = vunpack.c.l.b16 %v1702
    %v1735 = vunpack.c.l.b16 %v1703
    %v1736 = vunpack.c.l.b16 %v1704
    %v1737 = vpack.c.b16 %v1722, %v1721
    %v1738 = vpack.c.b16 %v1724, %v1723
    %v1739 = vpack.c.b16 %v1726, %v1725
    %v1740 = vpack.c.b16 %v1728, %v1727
    %v1741 = vpack.c.b16 %v1730, %v1729
    %v1742 = vpack.c.b16 %v1732, %v1731
    %v1743 = vpack.c.b16 %v1734, %v1733
    %v1744 = vpack.c.b16 %v1736, %v1735
    %1753 = vmatprep.subr.bf16.mxu0 0
    %1754 = vmatpush1.bf16.msra.mxu0 %v1744
    %1755 = vmatprep.subr.bf16.mxu0 0
    %1756 = vmatpush1.bf16.msra.mxu0 %v1743
    %1757 = vmatprep.subr.bf16.mxu0 0
    %1758 = vmatpush1.bf16.msra.mxu0 %v1742
    %1759 = vmatprep.subr.bf16.mxu0 0
    %1760 = vmatpush1.bf16.msra.mxu0 %v1741
    %1761 = vmatprep.subr.bf16.mxu0 0
    %1762 = vmatpush1.bf16.msra.mxu0 %v1740
    %1763 = vmatprep.subr.bf16.mxu0 0
    %1764 = vmatpush1.bf16.msra.mxu0 %v1739
    %1765 = vmatprep.subr.bf16.mxu0 0
    %1766 = vmatpush1.bf16.msra.mxu0 %v1738
    %1767 = vmatprep.subr.bf16.mxu0 0
    %1768 = vmatpush1.bf16.msra.mxu0 %v1737
    %1769 = vmatprep.subr.bf16.mxu0 0
    %1770 = vmatpush2.bf16.msra.mxu0 0
    %1771 = vmatprep.subr.bf16.mxu0 0
    %1772 = vmatpush2.bf16.msra.mxu0 0
    %1773 = vmatprep.subr.bf16.mxu0 0
    %1774 = vmatpush2.bf16.msra.mxu0 0
    %1775 = vmatprep.subr.bf16.mxu0 0
    %1776 = vmatpush2.bf16.msra.mxu0 0
    %1777 = vmatprep.subr.bf16.mxu0 0
    %1778 = vmatpush2.bf16.msra.mxu0 0
    %1779 = vmatprep.subr.bf16.mxu0 0
    %1780 = vmatpush2.bf16.msra.mxu0 0
    %1781 = vmatprep.subr.bf16.mxu0 0
    %1782 = vmatpush2.bf16.msra.mxu0 0
    %1783 = vmatprep.subr.bf16.mxu0 0
    %1784 = vmatpush2.bf16.msra.mxu0 0
    %1785 = vmatprep.mubr.bf16.mxu0 0
    %1786 = vmatmul.mubr.bf16.gmra.mxu0 %v1684
    %v1787 = vpop.f32.mrf.mxu0
    %v1788 = vadd.f32 0.0, %v1787
    %v1789 = vpop.f32.mrf.mxu0
    %v1790 = vpop.f32.mrf.mxu0
    %v1791 = vadd.f32 0.0, %v1790
    %v1792 = vpop.f32.mrf.mxu0
    %1793 = vmatprep.mubr.bf16.mxu0 0
    %1794 = vmatmul.mubr.bf16.gmra.mxu0 %v1685
    %v1795 = vpop.f32.mrf.mxu0
    %v1796 = vadd.f32 0.0, %v1795
    %v1797 = vpop.f32.mrf.mxu0
    %v1798 = vpop.f32.mrf.mxu0
    %v1799 = vadd.f32 0.0, %v1798
    %v1800 = vpop.f32.mrf.mxu0
    %1801 = vmatprep.mubr.bf16.mxu0 0
    %1802 = vmatmul.mubr.bf16.gmra.mxu0 %v1686
    %v1803 = vpop.f32.mrf.mxu0
    %v1804 = vadd.f32 0.0, %v1803
    %v1805 = vpop.f32.mrf.mxu0
    %v1806 = vpop.f32.mrf.mxu0
    %v1807 = vadd.f32 0.0, %v1806
    %v1808 = vpop.f32.mrf.mxu0
    %1809 = vmatprep.mubr.bf16.mxu0 0
    %1810 = vmatmul.mubr.bf16.gmra.mxu0 %v1687
    %v1811 = vpop.f32.mrf.mxu0
    %v1812 = vadd.f32 0.0, %v1811
    %v1813 = vpop.f32.mrf.mxu0
    %v1814 = vpop.f32.mrf.mxu0
    %v1815 = vadd.f32 0.0, %v1814
    %v1816 = vpop.f32.mrf.mxu0
    %1817 = vdwg.mxu0
    %v1818 = vadd.f32 %v1391, %v1788
    %v1819 = vadd.f32 %v1392, %v1791
    %v1820 = vadd.f32 %v1393, %v1796
    %v1821 = vadd.f32 %v1394, %v1799
    %v1822 = vadd.f32 %v1395, %v1804
    %v1823 = vadd.f32 %v1396, %v1807
    %v1824 = vadd.f32 %v1397, %v1812
    %v1825 = vadd.f32 %v1398, %v1815
    %v1826 = vld [vmem:[%s6 + $0x3] sm:$0x1]
    %v1827 = vlaneseq
    %v1828 = vshrl.u32 %v1827, 7
    %v1829 = vsub.s32 0, %v1828
    %v1830 = vrot.slane %v1826, %v1829
    %v1831 = vadd.f32 %v1818, %v1830
    %v1832 = vadd.f32 %v1819, %v1830
    %v1833 = vadd.f32 %v1820, %v1830
    %v1834 = vadd.f32 %v1821, %v1830
    %v1835 = vadd.f32 %v1822, %v1830
    %v1836 = vadd.f32 %v1823, %v1830
    %v1837 = vadd.f32 %v1824, %v1830
    %v1838 = vadd.f32 %v1825, %v1830
    %v1839 = vpack.c.bf16 %v1832, %v1831
    %v1840 = vpack.c.bf16 %v1834, %v1833
    %v1841 = vpack.c.bf16 %v1836, %v1835
    %v1842 = vpack.c.bf16 %v1838, %v1837
    %v1843 = vld [vmem:[%s7] sm:$0xf]
    %v1844 = vld [vmem:[%s7 + $0x4] sm:$0xf]
    %v1845 = vld [vmem:[%s7 + $0x8] sm:$0xf]
    %v1846 = vld [vmem:[%s7 + $0xc] sm:$0xf]
    %v1847 = vld [vmem:[%s7 + $0x10] sm:$0xf]
    %v1848 = vld [vmem:[%s7 + $0x14] sm:$0xf]
    %v1849 = vld [vmem:[%s7 + $0x18] sm:$0xf]
    %v1850 = vld [vmem:[%s7 + $0x1c] sm:$0xf]
    %v1851 = vld [vmem:[%s7 + $0x20] sm:$0xf]
    %v1852 = vld [vmem:[%s7 + $0x24] sm:$0xf]
    %v1853 = vld [vmem:[%s7 + $0x28] sm:$0xf]
    %v1854 = vld [vmem:[%s7 + $0x2c] sm:$0xf]
    %v1855 = vld [vmem:[%s7 + $0x30] sm:$0xf]
    %v1856 = vld [vmem:[%s7 + $0x34] sm:$0xf]
    %v1857 = vld [vmem:[%s7 + $0x38] sm:$0xf]
    %v1858 = vld [vmem:[%s7 + $0x3c] sm:$0xf]
    %v1875 = vunpack.c.l.b16 %v1843
    %v1876 = vunpack.c.l.b16 %v1844
    %v1877 = vunpack.c.l.b16 %v1845
    %v1878 = vunpack.c.l.b16 %v1846
    %v1879 = vunpack.c.l.b16 %v1847
    %v1880 = vunpack.c.l.b16 %v1848
    %v1881 = vunpack.c.l.b16 %v1849
    %v1882 = vunpack.c.l.b16 %v1850
    %v1883 = vunpack.c.l.b16 %v1851
    %v1884 = vunpack.c.l.b16 %v1852
    %v1885 = vunpack.c.l.b16 %v1853
    %v1886 = vunpack.c.l.b16 %v1854
    %v1887 = vunpack.c.l.b16 %v1855
    %v1888 = vunpack.c.l.b16 %v1856
    %v1889 = vunpack.c.l.b16 %v1857
    %v1890 = vunpack.c.l.b16 %v1858
    %v1891 = vpack.c.b16 %v1876, %v1875
    %v1892 = vpack.c.b16 %v1878, %v1877
    %v1893 = vpack.c.b16 %v1880, %v1879
    %v1894 = vpack.c.b16 %v1882, %v1881
    %v1895 = vpack.c.b16 %v1884, %v1883
    %v1896 = vpack.c.b16 %v1886, %v1885
    %v1897 = vpack.c.b16 %v1888, %v1887
    %v1898 = vpack.c.b16 %v1890, %v1889
    %1907 = vmatprep.subr.bf16.mxu0 0
    %1908 = vmatpush1.bf16.msra.mxu0 %v1898
    %1909 = vmatprep.subr.bf16.mxu0 0
    %1910 = vmatpush1.bf16.msra.mxu0 %v1897
    %1911 = vmatprep.subr.bf16.mxu0 0
    %1912 = vmatpush1.bf16.msra.mxu0 %v1896
    %1913 = vmatprep.subr.bf16.mxu0 0
    %1914 = vmatpush1.bf16.msra.mxu0 %v1895
    %1915 = vmatprep.subr.bf16.mxu0 0
    %1916 = vmatpush1.bf16.msra.mxu0 %v1894
    %1917 = vmatprep.subr.bf16.mxu0 0
    %1918 = vmatpush1.bf16.msra.mxu0 %v1893
    %1919 = vmatprep.subr.bf16.mxu0 0
    %1920 = vmatpush1.bf16.msra.mxu0 %v1892
    %1921 = vmatprep.subr.bf16.mxu0 0
    %1922 = vmatpush1.bf16.msra.mxu0 %v1891
    %1923 = vmatprep.subr.bf16.mxu0 0
    %1924 = vmatpush2.bf16.msra.mxu0 0
    %1925 = vmatprep.subr.bf16.mxu0 0
    %1926 = vmatpush2.bf16.msra.mxu0 0
    %1927 = vmatprep.subr.bf16.mxu0 0
    %1928 = vmatpush2.bf16.msra.mxu0 0
    %1929 = vmatprep.subr.bf16.mxu0 0
    %1930 = vmatpush2.bf16.msra.mxu0 0
    %1931 = vmatprep.subr.bf16.mxu0 0
    %1932 = vmatpush2.bf16.msra.mxu0 0
    %1933 = vmatprep.subr.bf16.mxu0 0
    %1934 = vmatpush2.bf16.msra.mxu0 0
    %1935 = vmatprep.subr.bf16.mxu0 0
    %1936 = vmatpush2.bf16.msra.mxu0 0
    %1937 = vmatprep.subr.bf16.mxu0 0
    %1938 = vmatpush2.bf16.msra.mxu0 0
    %1939 = vmatprep.mubr.bf16.mxu0 0
    %1940 = vmatmul.mubr.bf16.gmra.mxu0 %v1839
    %v1941 = vpop.f32.mrf.mxu0
    %v1942 = vadd.f32 0.0, %v1941
    %v1943 = vpop.f32.mrf.mxu0
    %v1944 = vpop.f32.mrf.mxu0
    %v1945 = vadd.f32 0.0, %v1944
    %v1946 = vpop.f32.mrf.mxu0
    %1947 = vmatprep.mubr.bf16.mxu0 0
    %1948 = vmatmul.mubr.bf16.gmra.mxu0 %v1840
    %v1949 = vpop.f32.mrf.mxu0
    %v1950 = vadd.f32 0.0, %v1949
    %v1951 = vpop.f32.mrf.mxu0
    %v1952 = vpop.f32.mrf.mxu0
    %v1953 = vadd.f32 0.0, %v1952
    %v1954 = vpop.f32.mrf.mxu0
    %1955 = vmatprep.mubr.bf16.mxu0 0
    %1956 = vmatmul.mubr.bf16.gmra.mxu0 %v1841
    %v1957 = vpop.f32.mrf.mxu0
    %v1958 = vadd.f32 0.0, %v1957
    %v1959 = vpop.f32.mrf.mxu0
    %v1960 = vpop.f32.mrf.mxu0
    %v1961 = vadd.f32 0.0, %v1960
    %v1962 = vpop.f32.mrf.mxu0
    %1963 = vmatprep.mubr.bf16.mxu0 0
    %1964 = vmatmul.mubr.bf16.gmra.mxu0 %v1842
    %v1965 = vpop.f32.mrf.mxu0
    %v1966 = vadd.f32 0.0, %v1965
    %v1967 = vpop.f32.mrf.mxu0
    %v1968 = vpop.f32.mrf.mxu0
    %v1969 = vadd.f32 0.0, %v1968
    %v1970 = vpop.f32.mrf.mxu0
    %1971 = vdwg.mxu0
    %v1972 = vpack.c.bf16 %v1945, %v1942
    %v1973 = vpack.c.bf16 %v1953, %v1950
    %v1974 = vpack.c.bf16 %v1961, %v1958
    %v1975 = vpack.c.bf16 %v1969, %v1966
    %v1976 = vld [vmem:[%s8] sm:$0xf]
    %v1977 = vld [vmem:[%s8 + $0x4] sm:$0xf]
    %v1978 = vld [vmem:[%s8 + $0x8] sm:$0xf]
    %v1979 = vld [vmem:[%s8 + $0xc] sm:$0xf]
    %v1980 = vld [vmem:[%s9] sm:$0xf]
    %1981 = vxpose.xlu0.c.b16.start [1/8] %v1972, 128
    %1982 = vxpose.xlu0.c.b16.cont [2/8] %v1973, 128
    %1983 = vxpose.xlu0.c.b16.cont [3/8] 0, 128
    %1984 = vxpose.xlu0.c.b16.cont [4/8] 0, 128
    %1985 = vxpose.xlu0.c.b16.cont [5/8] 0, 128
    %1986 = vxpose.xlu0.c.b16.cont [6/8] 0, 128
    %1987 = vxpose.xlu0.c.b16.cont [7/8] 0, 128
    %1988 = vxpose.xlu0.c.b16.end [8/8] 0, 128
    %v1989 = vpop.trf.xlu0
    %v1990 = vpop.trf.xlu0
    %v1991 = vpop.trf.xlu0
    %v1992 = vpop.trf.xlu0
    %v1993 = vpop.trf.xlu0
    %v1994 = vpop.trf.xlu0
    %v1995 = vpop.trf.xlu0
    %v1996 = vpop.trf.xlu0
    %v2001 = vunpack.c.l.b16 %v1976
    %v2002 = vunpack.c.l.b16 %v1977
    %v2003 = vunpack.c.l.b16 %v1978
    %v2004 = vunpack.c.l.b16 %v1979
    %v2005 = vpack.c.b16 %v2002, %v2001
    %v2006 = vpack.c.b16 %v2004, %v2003
    %vm2009 = vcmask 261120
    %v2011 = vsel %vm2009, %v1989, 0
    %2013 = vmatprep.subr.bf16.mxu0 0
    %2014 = vmatpush1.bf16.msra.mxu0 0
    %2015 = vmatprep.subr.bf16.mxu0 0
    %2016 = vmatpush1.bf16.msra.mxu0 0
    %2017 = vmatprep.subr.bf16.mxu0 0
    %2018 = vmatpush1.bf16.msra.mxu0 0
    %2019 = vmatprep.subr.bf16.mxu0 0
    %2020 = vmatpush1.bf16.msra.mxu0 0
    %2021 = vmatprep.subr.bf16.mxu0 0
    %2022 = vmatpush1.bf16.msra.mxu0 0
    %2023 = vmatprep.subr.bf16.mxu0 0
    %2024 = vmatpush1.bf16.msra.mxu0 0
    %2025 = vmatprep.subr.bf16.mxu0 0
    %2026 = vmatpush1.bf16.msra.mxu0 %v2006
    %2027 = vmatprep.subr.bf16.mxu0 0
    %2028 = vmatpush1.bf16.msra.mxu0 %v2005
    %2029 = vmatprep.subr.bf16.mxu0 0
    %2030 = vmatpush2.bf16.msra.mxu0 0
    %2031 = vmatprep.subr.bf16.mxu0 0
    %2032 = vmatpush2.bf16.msra.mxu0 0
    %2033 = vmatprep.subr.bf16.mxu0 0
    %2034 = vmatpush2.bf16.msra.mxu0 0
    %2035 = vmatprep.subr.bf16.mxu0 0
    %2036 = vmatpush2.bf16.msra.mxu0 0
    %2037 = vmatprep.subr.bf16.mxu0 0
    %2038 = vmatpush2.bf16.msra.mxu0 0
    %2039 = vmatprep.subr.bf16.mxu0 0
    %2040 = vmatpush2.bf16.msra.mxu0 0
    %2041 = vmatprep.subr.bf16.mxu0 0
    %2042 = vmatpush2.bf16.msra.mxu0 0
    %2043 = vmatprep.subr.bf16.mxu0 0
    %2044 = vmatpush2.bf16.msra.mxu0 0
    %2045 = vmatprep.mubr.bf16.mxu0 0
    %2046 = vmatmul.mubr.bf16.gmra.mxu0 %v2011
    %v2047 = vpop.f32.mrf.mxu0
    %v2048 = vadd.f32 %v1980, %v2047
    %v2049 = vpop.f32.mrf.mxu0
    %v2050 = vpop.f32.mrf.mxu0
    %v2051 = vpop.f32.mrf.mxu0
    %2052 = vdwg.mxu0
    %v2053 = vmul.f32 %v2048, %v2048
    %vm2054 = vcmask 257024
    %v2055 = vsel %vm2054, %v2053, 0.0
    %2056 = vadd.xlane.f32.xlu0 %v2055
    %v2057 = vpop.xlane.xlu0 %2056
    %v2058 = vrot.slane %v2057, 4
    %v2059 = vadd.f32 %v2057, %v2058
    %v2060 = vrot.slane %v2059, 2
    %v2061 = vadd.f32 %v2059, %v2060
    %v2062 = vrot.slane %v2061, 1
    %v2063 = vadd.f32 %v2061, %v2062
    %s2064 = vtos %v2063
    %s2065 = smax.f32 %s2064, 1e-24
    %v2066 = vstv %s2065
    %v2067 = vrsqrt.pop %v2066
    %s2068 = vtos %v2067
    %v2069 = vstv %s2068
    %v2070 = vmul.f32 %v2048, %v2069
    %2071 = vst.msk [vmem:[#allocation7] sm:$0xf] %vm2054, %v2070
    %2072 = vxpose.xlu0.c.b16.start [1/8] %v1974, 128
    %2073 = vxpose.xlu0.c.b16.cont [2/8] %v1975, 128
    %2074 = vxpose.xlu0.c.b16.cont [3/8] 0, 128
    %2075 = vxpose.xlu0.c.b16.cont [4/8] 0, 128
    %2076 = vxpose.xlu0.c.b16.cont [5/8] 0, 128
    %2077 = vxpose.xlu0.c.b16.cont [6/8] 0, 128
    %2078 = vxpose.xlu0.c.b16.cont [7/8] 0, 128
    %2079 = vxpose.xlu0.c.b16.end [8/8] 0, 128
    %v2080 = vpop.trf.xlu0
    %v2081 = vpop.trf.xlu0
    %v2082 = vpop.trf.xlu0
    %v2083 = vpop.trf.xlu0
    %v2084 = vpop.trf.xlu0
    %v2085 = vpop.trf.xlu0
    %v2086 = vpop.trf.xlu0
    %v2087 = vpop.trf.xlu0
    %v2089 = vsel %vm2009, %v2080, 0
    %2091 = vmatprep.subr.bf16.mxu0 0
    %2092 = vmatpush1.bf16.msra.mxu0 0
    %2093 = vmatprep.subr.bf16.mxu0 0
    %2094 = vmatpush1.bf16.msra.mxu0 0
    %2095 = vmatprep.subr.bf16.mxu0 0
    %2096 = vmatpush1.bf16.msra.mxu0 0
    %2097 = vmatprep.subr.bf16.mxu0 0
    %2098 = vmatpush1.bf16.msra.mxu0 0
    %2099 = vmatprep.subr.bf16.mxu0 0
    %2100 = vmatpush1.bf16.msra.mxu0 0
    %2101 = vmatprep.subr.bf16.mxu0 0
    %2102 = vmatpush1.bf16.msra.mxu0 0
    %2103 = vmatprep.subr.bf16.mxu0 0
    %2104 = vmatpush1.bf16.msra.mxu0 %v2006
    %2105 = vmatprep.subr.bf16.mxu0 0
    %2106 = vmatpush1.bf16.msra.mxu0 %v2005
    %2107 = vmatprep.subr.bf16.mxu0 0
    %2108 = vmatpush2.bf16.msra.mxu0 0
    %2109 = vmatprep.subr.bf16.mxu0 0
    %2110 = vmatpush2.bf16.msra.mxu0 0
    %2111 = vmatprep.subr.bf16.mxu0 0
    %2112 = vmatpush2.bf16.msra.mxu0 0
    %2113 = vmatprep.subr.bf16.mxu0 0
    %2114 = vmatpush2.bf16.msra.mxu0 0
    %2115 = vmatprep.subr.bf16.mxu0 0
    %2116 = vmatpush2.bf16.msra.mxu0 0
    %2117 = vmatprep.subr.bf16.mxu0 0
    %2118 = vmatpush2.bf16.msra.mxu0 0
    %2119 = vmatprep.subr.bf16.mxu0 0
    %2120 = vmatpush2.bf16.msra.mxu0 0
    %2121 = vmatprep.subr.bf16.mxu0 0
    %2122 = vmatpush2.bf16.msra.mxu0 0
    %2123 = vmatprep.mubr.bf16.mxu0 0
    %2124 = vmatmul.mubr.bf16.gmra.mxu0 %v2089
    %v2125 = vpop.f32.mrf.mxu0
    %v2126 = vadd.f32 %v1980, %v2125
    %v2127 = vpop.f32.mrf.mxu0
    %v2128 = vpop.f32.mrf.mxu0
    %v2129 = vpop.f32.mrf.mxu0
    %2130 = vdwg.mxu0
    %v2131 = vmul.f32 %v2126, %v2126
    %v2132 = vsel %vm2054, %v2131, 0.0
    %2133 = vadd.xlane.f32.xlu0 %v2132
    %v2134 = vpop.xlane.xlu0 %2133
    %v2135 = vrot.slane %v2134, 4
    %v2136 = vadd.f32 %v2134, %v2135
    %v2137 = vrot.slane %v2136, 2
    %v2138 = vadd.f32 %v2136, %v2137
    %v2139 = vrot.slane %v2138, 1
    %v2140 = vadd.f32 %v2138, %v2139
    %s2141 = vtos %v2140
    %s2142 = smax.f32 %s2141, 1e-24
    %v2143 = vstv %s2142
    %v2144 = vrsqrt.pop %v2143
    %s2145 = vtos %v2144
    %v2146 = vstv %s2145
    %v2147 = vmul.f32 %v2126, %v2146
    %s2148 = scalar_lea.vmem [#allocation7], 4
    %2149 = vst.msk [vmem:[%s2148] sm:$0xf] %vm2054, %v2147
    // Predicated region
    $region50: #{tpu_custom_call.1} parent=1 // pred_check
      _
    $region51: #{tpu_custom_call.1} parent=1 // pred_check_branch
      %2151 = sbr.rel (0) target = $region53
    $region52: #{tpu_custom_call.1} parent=1 // pred_region
      %s2153 = ssub.s32 128, 128
      %2154 = vsyncadd [#allocation4], %s2153
      %s2155 = sshll.u32 [#allocation7], 4
      %s2156 = int_to_ptr.vmem [resolvable:$true] %s2155
      %2161 = dma.vmem_to_hbm [thread:$0]  %s2156, 128, %s10, [#allocation4], 64, 64, 4
    $region53: #{tpu_custom_call.1} parent=1 // pred_fallthru
      _
    // Predicated region
    $region54: #{tpu_custom_call.1} parent=1 // pred_check
      _
    $region55: #{tpu_custom_call.1} parent=1 // pred_check_branch
      %2163 = sbr.rel (0) target = $region57
    $region56: #{tpu_custom_call.1} parent=1 // pred_region
      %2164 = dma.done [#allocation4], 128
    $region57: #{tpu_custom_call.1} parent=1 // pred_fallthru
      _
    %2165 = vsyncpa [#allocation3], 1
    %2166 = vsyncpa [#allocation6], 1
    %2167 = vsyncpa [#allocation4], 1

</llo_original>
